<compile_context>
chip_gen: v7x
topology: tpu7x:2x2x1
jax: 0.10.0
libtpu: 0.0.40
codegen_flags: <defaults>
</compile_context>

<pallas_src>
import math
import numpy as np
import jax
import jax.numpy as jnp
from jax import lax
from jax.experimental import pallas as pl
from jax.experimental.pallas import tpu as pltpu

# ---- static configuration ---------------------------------------------------
IN_CH = 4
OUT_CH = 8
EMB_DIM = 32
NUM_GROUPS = min(OUT_CH // 4, 32)   # = 2, used for both GroupNorms (as in the module)
EPS = 1e-6
SCALE_BY_SQRT2 = True
INV_SQRT2 = 1.0 / math.sqrt(2.0)

PREP_ORDER = ["gn1_gamma_row", "gn1_beta_row", "gn1_masks", "w1_cat", "b1_row",
              "we_big", "be_row",
              "gn2_gamma_row", "gn2_beta_row", "gn2_masks", "w2_cat", "b2_row",
              "wskip_big", "bskip_row"]


# ---- in-kernel helpers -------------------------------------------------------
def _silu(x):
    return x * jax.nn.sigmoid(x)


def _group_norm_ld(h, gamma_row, beta_row, masks):
    """GroupNorm on a lane-dense [H, W*C] slab (one sample).

    Single-pass statistics: sublane-reduce first (sum over H -> [1, W*C]), then
    per-group masked lane reductions on the reduced rows only.  gamma/beta and
    the 0/1 group masks are host-prepared, so the kernel does no lane broadcast
    or iota setup.  Final normalization is one fused `h * a + b`.
    """
    hh, wc = h.shape
    cnt = float(hh) * float(wc) / float(NUM_GROUPS)       # = H * W * (C / G)
    s1 = jnp.sum(h, axis=0, keepdims=True)                # [1, W*C]
    s2 = jnp.sum(h * h, axis=0, keepdims=True)            # [1, W*C]

    scale_row = jnp.zeros((1, wc), jnp.float32)
    shift_row = jnp.zeros((1, wc), jnp.float32)
    for g in range(NUM_GROUPS):
        m = masks[g:g + 1, :]                              # [1, W*C] 0/1 mask
        mu = jnp.sum(s1 * m) / cnt
        ex2 = jnp.sum(s2 * m) / cnt
        inv = lax.rsqrt(ex2 - mu * mu + EPS)
        scale_row = scale_row + m * inv
        shift_row = shift_row + m * (mu * inv)

    a = scale_row * gamma_row
    b = beta_row - shift_row * gamma_row
    return h * a + b


def _conv3x3_fused(h, w_ref, b_row, row_idx):
    """'SAME' 3x3 conv in lane-dense layout as a single MXU matmul.

    h:     [H, W*Cin] f32
    w_ref: [3*W*Cin, W*Cout] bf16 — banded weights, kh taps concatenated on K
           (kw taps folded into the band structure on the host).
    Row shifts (kh = 0 / 2 taps) use pltpu.roll on the XLU plus a one-row mask.
    """
    hh = h.shape[0]
    h_up = jnp.where(row_idx == 0, 0.0, pltpu.roll(h, 1, axis=0))        # h[r-1]
    h_dn = jnp.where(row_idx == hh - 1, 0.0, pltpu.roll(h, hh - 1, axis=0))  # h[r+1]
    lhs = jnp.concatenate([h_up, h, h_dn], axis=1).astype(jnp.bfloat16)  # [H, 3*W*Cin]
    return jnp.dot(lhs, w_ref[...], preferred_element_type=jnp.float32) + b_row


# ---- the fused kernel --------------------------------------------------------
def resblock_kernel(x_ref, emb_ref,
                    g1_ref, bt1_ref, m1_ref, w1_ref, b1_ref,
                    we_ref, be_ref,
                    g2_ref, bt2_ref, m2_ref, w2_ref, b2_ref,
                    wsk_ref, bsk_ref,
                    out_ref):
    H = x_ref.shape[1]
    x = x_ref[0]                                           # [H, W*Cin]  lane-dense

    row_idx = lax.broadcasted_iota(jnp.int32, (H, 1), 0)   # tiny; shared by both convs

    # in_layers: GroupNorm -> SiLU -> Conv3x3(in_ch -> out_ch)
    h = _group_norm_ld(x, g1_ref[...], bt1_ref[...], m1_ref[...])
    h = _silu(h)
    h = _conv3x3_fused(h, w1_ref, b1_ref[...], row_idx)    # [H, W*Cout]

    # emb_layers: SiLU -> Linear(emb_dim -> out_ch); weight pre-tiled to [emb, W*Cout]
    eo = jnp.dot(_silu(emb_ref[0]).astype(jnp.bfloat16), we_ref[...],
                 preferred_element_type=jnp.float32) + be_ref[...]   # [1, W*Cout]
    h = h + eo                                                       # broadcast over H

    # out_layers: GroupNorm -> SiLU -> Dropout(p=0 => identity) -> Conv3x3
    h = _group_norm_ld(h, g2_ref[...], bt2_ref[...], m2_ref[...])
    h = _silu(h)
    h = _conv3x3_fused(h, w2_ref, b2_ref[...], row_idx)    # [H, W*Cout]

    # skip connection (1x1 conv, block-diagonal lane-dense weight) + residual add
    skip = jnp.dot(x.astype(jnp.bfloat16), wsk_ref[...],
                   preferred_element_type=jnp.float32) + bsk_ref[...]
    out = skip + h
    if SCALE_BY_SQRT2:
        out = out * INV_SQRT2
    out_ref[0] = out                                       # full-lane [H, W*Cout] store


# ---- wrapper -----------------------------------------------------------------
def resnet_block_biggan(x_nchw, emb, prepared):
    B, C, H, W = x_nchw.shape
    assert C == IN_CH and emb.shape == (B, EMB_DIM)

    # NCHW -> lane-dense [B, H, W*Cin].
    # TODO(synk): in a lane-dense pipeline these boundary transposes should be
    #             removed (keep activations in [B, H, W*C] between blocks).
    x_ld = jnp.transpose(x_nchw.astype(jnp.float32), (0, 2, 3, 1)).reshape(B, H, W * IN_CH)
    emb3 = emb.astype(jnp.float32)[:, None, :]             # [B, 1, emb_dim]

    def const_spec(arr):
        nd = arr.ndim
        return pl.BlockSpec(arr.shape, lambda b, _nd=nd: (0,) * _nd)

    in_specs = [
        pl.BlockSpec((1, H, W * IN_CH), lambda b: (b, 0, 0)),
        pl.BlockSpec((1, 1, EMB_DIM), lambda b: (b, 0, 0)),
    ] + [const_spec(prepared[k]) for k in PREP_ORDER]

    out_ld = pl.pallas_call(
        resblock_kernel,
        out_shape=jax.ShapeDtypeStruct((B, H, W * OUT_CH), jnp.float32),
        grid_spec=pltpu.PrefetchScalarGridSpec(
            num_scalar_prefetch=0,
            grid=(B,),
            in_specs=in_specs,
            out_specs=pl.BlockSpec((1, H, W * OUT_CH), lambda b: (b, 0, 0)),
        ),
        compiler_params=pltpu.CompilerParams(dimension_semantics=("parallel",)),
    )(x_ld, emb3, *[prepared[k] for k in PREP_ORDER])

    # lane-dense [B, H, W*Cout] -> NCHW
    return jnp.transpose(out_ld.reshape(B, H, W, OUT_CH), (0, 3, 1, 2))


# ---- host-side parameter preparation (done once) -----------------------------
def prepare_params(p, W):
    """Re-pack module parameters into lane-dense kernel operands."""
    Ci, Co = IN_CH, OUT_CH
    f32 = np.float32

    def row_tile(v, c):
        return jnp.asarray(np.tile(np.asarray(v, f32).reshape(1, c), (1, W)))

    def build_gn_masks(c):
        lanes = np.arange(W * c)
        gid = (lanes % c) // (c // NUM_GROUPS)
        m = np.zeros((NUM_GROUPS, W * c), f32)
        for g in range(NUM_GROUPS):
            m[g] = (gid == g).astype(f32)
        return jnp.asarray(m)

    def build_wcat(w_hwio):
        # [3, 3, ci, co] -> [3*W*ci, W*co]: banded (kw folded into lanes),
        # kh taps concatenated along K in the order [x[r-1], x[r], x[r+1]].
        w = np.asarray(w_hwio, f32)
        _, _, ci, co = w.shape
        out = np.zeros((3, W * ci, W * co), f32)
        for kh in range(3):
            for wo in range(W):
                for kw in range(3):
                    wi = wo + kw - 1
                    if 0 <= wi < W:
                        out[kh, wi * ci:(wi + 1) * ci, wo * co:(wo + 1) * co] = w[kh, kw]
        return jnp.asarray(out.reshape(3 * W * ci, W * co), jnp.bfloat16)

    wskip = np.asarray(p["wskip"], f32)
    return {
        "gn1_gamma_row": row_tile(p["gn1_gamma"], Ci),
        "gn1_beta_row": row_tile(p["gn1_beta"], Ci),
        "gn1_masks": build_gn_masks(Ci),
        "w1_cat": build_wcat(p["w1"]),
        "b1_row": row_tile(p["b1"], Co),
        "we_big": jnp.asarray(np.tile(np.asarray(p["we"], f32), (1, W)), jnp.bfloat16),
        "be_row": row_tile(p["be"], Co),
        "gn2_gamma_row": row_tile(p["gn2_gamma"], Co),
        "gn2_beta_row": row_tile(p["gn2_beta"], Co),
        "gn2_masks": build_gn_masks(Co),
        "w2_cat": build_wcat(p["w2"]),
        "b2_row": row_tile(p["b2"], Co),
        "wskip_big": jnp.asarray(np.kron(np.eye(W, dtype=f32), wskip), jnp.bfloat16),
        "bskip_row": row_tile(p["bskip"], Co),
    }


# ---- deterministic synthetic parameters (shapes from the module __init__) ----
def init_params(key):
    ks = jax.random.split(key, 8)

    def rnd(k, shape, scale):
        return jax.random.normal(k, shape, jnp.float32) * scale

    return {
        "gn1_gamma": jnp.ones((1, IN_CH), jnp.float32),
        "gn1_beta": jnp.zeros((1, IN_CH), jnp.float32),
        "w1": rnd(ks[0], (3, 3, IN_CH, OUT_CH), 1.0 / math.sqrt(9 * IN_CH)),  # HWIO
        "b1": rnd(ks[1], (1, OUT_CH), 0.02),
        "we": rnd(ks[2], (EMB_DIM, OUT_CH), 1.0 / math.sqrt(EMB_DIM)),
        "be": rnd(ks[3], (1, OUT_CH), 0.02),
        "gn2_gamma": jnp.ones((1, OUT_CH), jnp.float32),
        "gn2_beta": jnp.zeros((1, OUT_CH), jnp.float32),
        # NOTE: zero_module() zero-inits this conv in the PyTorch __init__; nonzero
        # deterministic synthetic weights are used so the kernel hot path is exercised.
        "w2": rnd(ks[4], (3, 3, OUT_CH, OUT_CH), 1.0 / math.sqrt(9 * OUT_CH)),
        "b2": rnd(ks[5], (1, OUT_CH), 0.02),
        "wskip": rnd(ks[6], (IN_CH, OUT_CH), 1.0 / math.sqrt(IN_CH)),         # 1x1 skip conv
        "bskip": rnd(ks[7], (1, OUT_CH), 0.02),
    }


# ---- pure-JAX reference (XLA convs) for the correctness check -----------------
def reference(x_nchw, emb, p):
    def gn(x, gamma, beta):
        B, C, H, W = x.shape
        g = NUM_GROUPS
        xg = x.reshape(B, g, C // g, H, W)
        mean = xg.mean(axis=(2, 3, 4), keepdims=True)
        var = ((xg - mean) ** 2).mean(axis=(2, 3, 4), keepdims=True)
        xn = ((xg - mean) / jnp.sqrt(var + EPS)).reshape(B, C, H, W)
        return xn * gamma.reshape(1, C, 1, 1) + beta.reshape(1, C, 1, 1)

    def conv3x3(x, w_hwio, b):
        y = lax.conv_general_dilated(
            x, w_hwio, window_strides=(1, 1), padding=((1, 1), (1, 1)),
            dimension_numbers=("NCHW", "HWIO", "NCHW"))
        return y + b.reshape(1, -1, 1, 1)

    h = jax.nn.silu(gn(x_nchw, p["gn1_gamma"][0], p["gn1_beta"][0]))
    h = conv3x3(h, p["w1"], p["b1"][0])
    eo = jax.nn.silu(emb) @ p["we"] + p["be"][0]
    h = h + eo[:, :, None, None]
    h = jax.nn.silu(gn(h, p["gn2_gamma"][0], p["gn2_beta"][0]))
    h = conv3x3(h, p["w2"], p["b2"][0])
    skip = jnp.einsum("bchw,co->bohw", x_nchw, p["wskip"]) + p["bskip"][0].reshape(1, -1, 1, 1)
    out = skip + h
    if SCALE_BY_SQRT2:
        out = out * INV_SQRT2
    return out


if __name__ == "__main__":
    B, H, W = 2, 16, 16
    key = jax.random.PRNGKey(0)
    kx, ke, kp = jax.random.split(key, 3)
    x = jax.random.normal(kx, (B, IN_CH, H, W), jnp.float32)     # NCHW, like PyTorch
    emb = jax.random.normal(ke, (B, EMB_DIM), jnp.float32)

    params = init_params(kp)
    prepared = prepare_params(params, W)                         # one-time repack

    forward = jax.jit(resnet_block_biggan)
    out = jax.block_until_ready(forward(x, emb, prepared))
    assert out.shape == (B, OUT_CH, H, W)

    ref = reference(x, emb, params)
    np.testing.assert_allclose(np.asarray(out), np.asarray(ref), rtol=5e-2, atol=5e-2)

    print("KERNEL_OK")
</pallas_src>

<mosaic_0001>
module attributes {stable_mosaic.version = 11 : i64} {
  func.func @resblock_kernel(%arg0: i32, %arg1: memref<1x16x64xf32, #tpu.memory_space<vmem>>, %arg2: memref<1x1x32xf32, #tpu.memory_space<vmem>>, %arg3: memref<1x64xf32, #tpu.memory_space<vmem>>, %arg4: memref<1x64xf32, #tpu.memory_space<vmem>>, %arg5: memref<2x64xf32, #tpu.memory_space<vmem>>, %arg6: memref<192x128xbf16, #tpu.memory_space<vmem>>, %arg7: memref<1x128xf32, #tpu.memory_space<vmem>>, %arg8: memref<32x128xbf16, #tpu.memory_space<vmem>>, %arg9: memref<1x128xf32, #tpu.memory_space<vmem>>, %arg10: memref<1x128xf32, #tpu.memory_space<vmem>>, %arg11: memref<1x128xf32, #tpu.memory_space<vmem>>, %arg12: memref<2x128xf32, #tpu.memory_space<vmem>>, %arg13: memref<384x128xbf16, #tpu.memory_space<vmem>>, %arg14: memref<1x128xf32, #tpu.memory_space<vmem>>, %arg15: memref<64x128xbf16, #tpu.memory_space<vmem>>, %arg16: memref<1x128xf32, #tpu.memory_space<vmem>>, %arg17: memref<1x16x128xf32, #tpu.memory_space<vmem>>) attributes {dimension_semantics = [#tpu.dimension_semantics<parallel>], iteration_bounds = array<i64: 2>, scalar_prefetch = 0 : i64, scratch_operands = 0 : i64, tpu.core_type = #tpu.core_type<tc>, window_params = [{transform_indices = @transform_0, window_bounds = array<i64: 1, 16, 64>}, {transform_indices = @transform_1, window_bounds = array<i64: 1, 1, 32>}, {pipeline_mode = #tpu.pipeline_mode<synchronous>, transform_indices = @transform_2, window_bounds = array<i64: 1, 64>}, {pipeline_mode = #tpu.pipeline_mode<synchronous>, transform_indices = @transform_3, window_bounds = array<i64: 1, 64>}, {pipeline_mode = #tpu.pipeline_mode<synchronous>, transform_indices = @transform_4, window_bounds = array<i64: 2, 64>}, {pipeline_mode = #tpu.pipeline_mode<synchronous>, transform_indices = @transform_5, window_bounds = array<i64: 192, 128>}, {pipeline_mode = #tpu.pipeline_mode<synchronous>, transform_indices = @transform_6, window_bounds = array<i64: 1, 128>}, {pipeline_mode = #tpu.pipeline_mode<synchronous>, transform_indices = @transform_7, window_bounds = array<i64: 32, 128>}, {pipeline_mode = #tpu.pipeline_mode<synchronous>, transform_indices = @transform_8, window_bounds = array<i64: 1, 128>}, {pipeline_mode = #tpu.pipeline_mode<synchronous>, transform_indices = @transform_9, window_bounds = array<i64: 1, 128>}, {pipeline_mode = #tpu.pipeline_mode<synchronous>, transform_indices = @transform_10, window_bounds = array<i64: 1, 128>}, {pipeline_mode = #tpu.pipeline_mode<synchronous>, transform_indices = @transform_11, window_bounds = array<i64: 2, 128>}, {pipeline_mode = #tpu.pipeline_mode<synchronous>, transform_indices = @transform_12, window_bounds = array<i64: 384, 128>}, {pipeline_mode = #tpu.pipeline_mode<synchronous>, transform_indices = @transform_13, window_bounds = array<i64: 1, 128>}, {pipeline_mode = #tpu.pipeline_mode<synchronous>, transform_indices = @transform_14, window_bounds = array<i64: 64, 128>}, {pipeline_mode = #tpu.pipeline_mode<synchronous>, transform_indices = @transform_15, window_bounds = array<i64: 1, 128>}, {transform_indices = @transform_16, window_bounds = array<i64: 1, 16, 128>}]} {
    %c0 = arith.constant 0 : index
    %c0_0 = arith.constant 0 : index
    %c0_1 = arith.constant 0 : index
    %0 = vector.load %arg1[%c0, %c0_0, %c0_1] : memref<1x16x64xf32, #tpu.memory_space<vmem>>, vector<1x16x64xf32>
    %1 = vector.shape_cast %0 : vector<1x16x64xf32> to vector<16x64xf32>
    %2 = tpu.iota {dimensions = array<i32: 0>} : vector<16x1xi32>
    %c0_2 = arith.constant 0 : index
    %c0_3 = arith.constant 0 : index
    %3 = vector.load %arg3[%c0_2, %c0_3] : memref<1x64xf32, #tpu.memory_space<vmem>>, vector<1x64xf32>
    %c0_4 = arith.constant 0 : index
    %c0_5 = arith.constant 0 : index
    %4 = vector.load %arg4[%c0_4, %c0_5] : memref<1x64xf32, #tpu.memory_space<vmem>>, vector<1x64xf32>
    %c0_6 = arith.constant 0 : index
    %c0_7 = arith.constant 0 : index
    %5 = vector.load %arg5[%c0_6, %c0_7] : memref<2x64xf32, #tpu.memory_space<vmem>>, vector<2x64xf32>
    %cst = arith.constant dense<0.000000e+00> : vector<64xf32>
    %6 = vector.multi_reduction <add>, %1, %cst [0] : vector<16x64xf32> to vector<64xf32>
    %7 = vector.shape_cast %6 : vector<64xf32> to vector<1x64xf32>
    %8 = arith.mulf %1, %1 : vector<16x64xf32>
    %cst_8 = arith.constant dense<0.000000e+00> : vector<64xf32>
    %9 = vector.multi_reduction <add>, %8, %cst_8 [0] : vector<16x64xf32> to vector<64xf32>
    %10 = vector.shape_cast %9 : vector<64xf32> to vector<1x64xf32>
    %cst_9 = arith.constant 0.000000e+00 : f32
    %11 = vector.broadcast %cst_9 : f32 to vector<1x64xf32>
    %cst_10 = arith.constant 0.000000e+00 : f32
    %12 = vector.broadcast %cst_10 : f32 to vector<1x64xf32>
    %13 = vector.extract_strided_slice %5 {offsets = [0, 0], sizes = [1, 64], strides = [1, 1]} : vector<2x64xf32> to vector<1x64xf32>
    %14 = arith.mulf %7, %13 : vector<1x64xf32>
    %15 = vector.shape_cast %14 : vector<1x64xf32> to vector<1x1x64xf32>
    %cst_11 = arith.constant dense<0.000000e+00> : vector<1xf32>
    %16 = vector.multi_reduction <add>, %15, %cst_11 [1, 2] : vector<1x1x64xf32> to vector<1xf32>
    %17 = vector.shape_cast %16 : vector<1xf32> to vector<1x1x1xf32>
    %18 = vector.extract %17[0, 0, 0] : f32 from vector<1x1x1xf32>
    %cst_12 = arith.constant 5.120000e+02 : f32
    %19 = arith.divf %18, %cst_12 : f32
    %20 = arith.mulf %10, %13 : vector<1x64xf32>
    %21 = vector.shape_cast %20 : vector<1x64xf32> to vector<1x1x64xf32>
    %cst_13 = arith.constant dense<0.000000e+00> : vector<1xf32>
    %22 = vector.multi_reduction <add>, %21, %cst_13 [1, 2] : vector<1x1x64xf32> to vector<1xf32>
    %23 = vector.shape_cast %22 : vector<1xf32> to vector<1x1x1xf32>
    %24 = vector.extract %23[0, 0, 0] : f32 from vector<1x1x1xf32>
    %cst_14 = arith.constant 5.120000e+02 : f32
    %25 = arith.divf %24, %cst_14 : f32
    %26 = arith.mulf %19, %19 : f32
    %27 = arith.subf %25, %26 : f32
    %cst_15 = arith.constant 9.99999997E-7 : f32
    %28 = arith.addf %27, %cst_15 : f32
    %29 = math.rsqrt %28 : f32
    %30 = vector.broadcast %29 : f32 to vector<1x64xf32>
    %31 = arith.mulf %13, %30 : vector<1x64xf32>
    %32 = arith.addf %11, %31 : vector<1x64xf32>
    %33 = arith.mulf %19, %29 : f32
    %34 = vector.broadcast %33 : f32 to vector<1x64xf32>
    %35 = arith.mulf %13, %34 : vector<1x64xf32>
    %36 = arith.addf %12, %35 : vector<1x64xf32>
    %37 = vector.extract_strided_slice %5 {offsets = [1, 0], sizes = [1, 64], strides = [1, 1]} : vector<2x64xf32> to vector<1x64xf32>
    %38 = arith.mulf %7, %37 : vector<1x64xf32>
    %39 = vector.shape_cast %38 : vector<1x64xf32> to vector<1x1x64xf32>
    %cst_16 = arith.constant dense<0.000000e+00> : vector<1xf32>
    %40 = vector.multi_reduction <add>, %39, %cst_16 [1, 2] : vector<1x1x64xf32> to vector<1xf32>
    %41 = vector.shape_cast %40 : vector<1xf32> to vector<1x1x1xf32>
    %42 = vector.extract %41[0, 0, 0] : f32 from vector<1x1x1xf32>
    %cst_17 = arith.constant 5.120000e+02 : f32
    %43 = arith.divf %42, %cst_17 : f32
    %44 = arith.mulf %10, %37 : vector<1x64xf32>
    %45 = vector.shape_cast %44 : vector<1x64xf32> to vector<1x1x64xf32>
    %cst_18 = arith.constant dense<0.000000e+00> : vector<1xf32>
    %46 = vector.multi_reduction <add>, %45, %cst_18 [1, 2] : vector<1x1x64xf32> to vector<1xf32>
    %47 = vector.shape_cast %46 : vector<1xf32> to vector<1x1x1xf32>
    %48 = vector.extract %47[0, 0, 0] : f32 from vector<1x1x1xf32>
    %cst_19 = arith.constant 5.120000e+02 : f32
    %49 = arith.divf %48, %cst_19 : f32
    %50 = arith.mulf %43, %43 : f32
    %51 = arith.subf %49, %50 : f32
    %cst_20 = arith.constant 9.99999997E-7 : f32
    %52 = arith.addf %51, %cst_20 : f32
    %53 = math.rsqrt %52 : f32
    %54 = vector.broadcast %53 : f32 to vector<1x64xf32>
    %55 = arith.mulf %37, %54 : vector<1x64xf32>
    %56 = arith.addf %32, %55 : vector<1x64xf32>
    %57 = arith.mulf %43, %53 : f32
    %58 = vector.broadcast %57 : f32 to vector<1x64xf32>
    %59 = arith.mulf %37, %58 : vector<1x64xf32>
    %60 = arith.addf %36, %59 : vector<1x64xf32>
    %61 = arith.mulf %56, %3 : vector<1x64xf32>
    %62 = arith.mulf %60, %3 : vector<1x64xf32>
    %63 = arith.subf %4, %62 : vector<1x64xf32>
    %64 = vector.broadcast %61 : vector<1x64xf32> to vector<16x64xf32>
    %65 = arith.mulf %1, %64 : vector<16x64xf32>
    %66 = vector.broadcast %63 : vector<1x64xf32> to vector<16x64xf32>
    %67 = arith.addf %65, %66 : vector<16x64xf32>
    %68 = arith.negf %67 : vector<16x64xf32>
    %69 = math.exp %68 : vector<16x64xf32>
    %cst_21 = arith.constant 1.000000e+00 : f32
    %70 = vector.broadcast %cst_21 : f32 to vector<16x64xf32>
    %71 = arith.addf %70, %69 : vector<16x64xf32>
    %72 = arith.divf %70, %71 : vector<16x64xf32>
    %73 = arith.mulf %67, %72 : vector<16x64xf32>
    %c0_22 = arith.constant 0 : index
    %c0_23 = arith.constant 0 : index
    %74 = vector.load %arg7[%c0_22, %c0_23] : memref<1x128xf32, #tpu.memory_space<vmem>>, vector<1x128xf32>
    %c0_i32 = arith.constant 0 : i32
    %75 = vector.broadcast %c0_i32 : i32 to vector<16x1xi32>
    %76 = arith.cmpi eq, %2, %75 : vector<16x1xi32>
    %c1_i32 = arith.constant 1 : i32
    %77 = tpu.dynamic_rotate %73 by %c1_i32 dim 0 : vector<16x64xf32>, i32 -> vector<16x64xf32>
    %cst_24 = arith.constant 0.000000e+00 : f32
    %78 = vector.shape_cast %76 : vector<16x1xi1> to vector<16x1xi1>
    %79 = vector.broadcast %78 : vector<16x1xi1> to vector<16x64xi1>
    %80 = vector.broadcast %cst_24 : f32 to vector<16x64xf32>
    %81 = arith.select %79, %80, %77 : vector<16x64xi1>, vector<16x64xf32>
    %c15_i32 = arith.constant 15 : i32
    %82 = vector.broadcast %c15_i32 : i32 to vector<16x1xi32>
    %83 = arith.cmpi eq, %2, %82 : vector<16x1xi32>
    %c15_i32_25 = arith.constant 15 : i32
    %84 = tpu.dynamic_rotate %73 by %c15_i32_25 dim 0 : vector<16x64xf32>, i32 -> vector<16x64xf32>
    %cst_26 = arith.constant 0.000000e+00 : f32
    %85 = vector.shape_cast %83 : vector<16x1xi1> to vector<16x1xi1>
    %86 = vector.broadcast %85 : vector<16x1xi1> to vector<16x64xi1>
    %87 = vector.broadcast %cst_26 : f32 to vector<16x64xf32>
    %88 = arith.select %86, %87, %84 : vector<16x64xi1>, vector<16x64xf32>
    %89 = tpu.concatenate %81, %73, %88 in 1 : vector<16x64xf32>, vector<16x64xf32>, vector<16x64xf32> -> vector<16x192xf32>
    %90 = arith.truncf %89 : vector<16x192xf32> to vector<16x192xbf16>
    %c0_27 = arith.constant 0 : index
    %c0_28 = arith.constant 0 : index
    %91 = vector.load %arg6[%c0_27, %c0_28] : memref<192x128xbf16, #tpu.memory_space<vmem>>, vector<192x128xbf16>
    %cst_29 = arith.constant dense<0.000000e+00> : vector<16x128xf32>
    %92 = tpu.matmul %90, %91, %cst_29 {dimension_numbers = #tpu.dot_dimension_numbers<[1], [0], [0], [1], [0, 0, 1, 1], [], []>} : vector<16x192xbf16>, vector<192x128xbf16>, vector<16x128xf32> -> vector<16x128xf32>
    %93 = vector.broadcast %74 : vector<1x128xf32> to vector<16x128xf32>
    %94 = arith.addf %92, %93 : vector<16x128xf32>
    %c0_30 = arith.constant 0 : index
    %c0_31 = arith.constant 0 : index
    %c0_32 = arith.constant 0 : index
    %95 = vector.load %arg2[%c0_30, %c0_31, %c0_32] : memref<1x1x32xf32, #tpu.memory_space<vmem>>, vector<1x1x32xf32>
    %96 = vector.shape_cast %95 : vector<1x1x32xf32> to vector<1x32xf32>
    %97 = arith.negf %96 : vector<1x32xf32>
    %98 = math.exp %97 : vector<1x32xf32>
    %cst_33 = arith.constant 1.000000e+00 : f32
    %99 = vector.broadcast %cst_33 : f32 to vector<1x32xf32>
    %100 = arith.addf %99, %98 : vector<1x32xf32>
    %101 = arith.divf %99, %100 : vector<1x32xf32>
    %102 = arith.mulf %96, %101 : vector<1x32xf32>
    %103 = arith.truncf %102 : vector<1x32xf32> to vector<1x32xbf16>
    %c0_34 = arith.constant 0 : index
    %c0_35 = arith.constant 0 : index
    %104 = vector.load %arg8[%c0_34, %c0_35] : memref<32x128xbf16, #tpu.memory_space<vmem>>, vector<32x128xbf16>
    %cst_36 = arith.constant dense<0.000000e+00> : vector<1x128xf32>
    %105 = tpu.matmul %103, %104, %cst_36 {dimension_numbers = #tpu.dot_dimension_numbers<[1], [0], [0], [1], [0, 0, 1, 1], [], []>} : vector<1x32xbf16>, vector<32x128xbf16>, vector<1x128xf32> -> vector<1x128xf32>
    %c0_37 = arith.constant 0 : index
    %c0_38 = arith.constant 0 : index
    %106 = vector.load %arg9[%c0_37, %c0_38] : memref<1x128xf32, #tpu.memory_space<vmem>>, vector<1x128xf32>
    %107 = arith.addf %105, %106 : vector<1x128xf32>
    %108 = vector.broadcast %107 : vector<1x128xf32> to vector<16x128xf32>
    %109 = arith.addf %94, %108 : vector<16x128xf32>
    %c0_39 = arith.constant 0 : index
    %c0_40 = arith.constant 0 : index
    %110 = vector.load %arg10[%c0_39, %c0_40] : memref<1x128xf32, #tpu.memory_space<vmem>>, vector<1x128xf32>
    %c0_41 = arith.constant 0 : index
    %c0_42 = arith.constant 0 : index
    %111 = vector.load %arg11[%c0_41, %c0_42] : memref<1x128xf32, #tpu.memory_space<vmem>>, vector<1x128xf32>
    %c0_43 = arith.constant 0 : index
    %c0_44 = arith.constant 0 : index
    %112 = vector.load %arg12[%c0_43, %c0_44] : memref<2x128xf32, #tpu.memory_space<vmem>>, vector<2x128xf32>
    %cst_45 = arith.constant dense<0.000000e+00> : vector<128xf32>
    %113 = vector.multi_reduction <add>, %109, %cst_45 [0] : vector<16x128xf32> to vector<128xf32>
    %114 = vector.shape_cast %113 : vector<128xf32> to vector<1x128xf32>
    %115 = arith.mulf %109, %109 : vector<16x128xf32>
    %cst_46 = arith.constant dense<0.000000e+00> : vector<128xf32>
    %116 = vector.multi_reduction <add>, %115, %cst_46 [0] : vector<16x128xf32> to vector<128xf32>
    %117 = vector.shape_cast %116 : vector<128xf32> to vector<1x128xf32>
    %cst_47 = arith.constant 0.000000e+00 : f32
    %118 = vector.broadcast %cst_47 : f32 to vector<1x128xf32>
    %cst_48 = arith.constant 0.000000e+00 : f32
    %119 = vector.broadcast %cst_48 : f32 to vector<1x128xf32>
    %120 = vector.extract_strided_slice %112 {offsets = [0, 0], sizes = [1, 128], strides = [1, 1]} : vector<2x128xf32> to vector<1x128xf32>
    %121 = arith.mulf %114, %120 : vector<1x128xf32>
    %122 = vector.shape_cast %121 : vector<1x128xf32> to vector<1x1x128xf32>
    %cst_49 = arith.constant dense<0.000000e+00> : vector<1xf32>
    %123 = vector.multi_reduction <add>, %122, %cst_49 [1, 2] : vector<1x1x128xf32> to vector<1xf32>
    %124 = vector.shape_cast %123 : vector<1xf32> to vector<1x1x1xf32>
    %125 = vector.extract %124[0, 0, 0] : f32 from vector<1x1x1xf32>
    %cst_50 = arith.constant 1.024000e+03 : f32
    %126 = arith.divf %125, %cst_50 : f32
    %127 = arith.mulf %117, %120 : vector<1x128xf32>
    %128 = vector.shape_cast %127 : vector<1x128xf32> to vector<1x1x128xf32>
    %cst_51 = arith.constant dense<0.000000e+00> : vector<1xf32>
    %129 = vector.multi_reduction <add>, %128, %cst_51 [1, 2] : vector<1x1x128xf32> to vector<1xf32>
    %130 = vector.shape_cast %129 : vector<1xf32> to vector<1x1x1xf32>
    %131 = vector.extract %130[0, 0, 0] : f32 from vector<1x1x1xf32>
    %cst_52 = arith.constant 1.024000e+03 : f32
    %132 = arith.divf %131, %cst_52 : f32
    %133 = arith.mulf %126, %126 : f32
    %134 = arith.subf %132, %133 : f32
    %cst_53 = arith.constant 9.99999997E-7 : f32
    %135 = arith.addf %134, %cst_53 : f32
    %136 = math.rsqrt %135 : f32
    %137 = vector.broadcast %136 : f32 to vector<1x128xf32>
    %138 = arith.mulf %120, %137 : vector<1x128xf32>
    %139 = arith.addf %118, %138 : vector<1x128xf32>
    %140 = arith.mulf %126, %136 : f32
    %141 = vector.broadcast %140 : f32 to vector<1x128xf32>
    %142 = arith.mulf %120, %141 : vector<1x128xf32>
    %143 = arith.addf %119, %142 : vector<1x128xf32>
    %144 = vector.extract_strided_slice %112 {offsets = [1, 0], sizes = [1, 128], strides = [1, 1]} : vector<2x128xf32> to vector<1x128xf32>
    %145 = arith.mulf %114, %144 : vector<1x128xf32>
    %146 = vector.shape_cast %145 : vector<1x128xf32> to vector<1x1x128xf32>
    %cst_54 = arith.constant dense<0.000000e+00> : vector<1xf32>
    %147 = vector.multi_reduction <add>, %146, %cst_54 [1, 2] : vector<1x1x128xf32> to vector<1xf32>
    %148 = vector.shape_cast %147 : vector<1xf32> to vector<1x1x1xf32>
    %149 = vector.extract %148[0, 0, 0] : f32 from vector<1x1x1xf32>
    %cst_55 = arith.constant 1.024000e+03 : f32
    %150 = arith.divf %149, %cst_55 : f32
    %151 = arith.mulf %117, %144 : vector<1x128xf32>
    %152 = vector.shape_cast %151 : vector<1x128xf32> to vector<1x1x128xf32>
    %cst_56 = arith.constant dense<0.000000e+00> : vector<1xf32>
    %153 = vector.multi_reduction <add>, %152, %cst_56 [1, 2] : vector<1x1x128xf32> to vector<1xf32>
    %154 = vector.shape_cast %153 : vector<1xf32> to vector<1x1x1xf32>
    %155 = vector.extract %154[0, 0, 0] : f32 from vector<1x1x1xf32>
    %cst_57 = arith.constant 1.024000e+03 : f32
    %156 = arith.divf %155, %cst_57 : f32
    %157 = arith.mulf %150, %150 : f32
    %158 = arith.subf %156, %157 : f32
    %cst_58 = arith.constant 9.99999997E-7 : f32
    %159 = arith.addf %158, %cst_58 : f32
    %160 = math.rsqrt %159 : f32
    %161 = vector.broadcast %160 : f32 to vector<1x128xf32>
    %162 = arith.mulf %144, %161 : vector<1x128xf32>
    %163 = arith.addf %139, %162 : vector<1x128xf32>
    %164 = arith.mulf %150, %160 : f32
    %165 = vector.broadcast %164 : f32 to vector<1x128xf32>
    %166 = arith.mulf %144, %165 : vector<1x128xf32>
    %167 = arith.addf %143, %166 : vector<1x128xf32>
    %168 = arith.mulf %163, %110 : vector<1x128xf32>
    %169 = arith.mulf %167, %110 : vector<1x128xf32>
    %170 = arith.subf %111, %169 : vector<1x128xf32>
    %171 = vector.broadcast %168 : vector<1x128xf32> to vector<16x128xf32>
    %172 = arith.mulf %109, %171 : vector<16x128xf32>
    %173 = vector.broadcast %170 : vector<1x128xf32> to vector<16x128xf32>
    %174 = arith.addf %172, %173 : vector<16x128xf32>
    %175 = arith.negf %174 : vector<16x128xf32>
    %176 = math.exp %175 : vector<16x128xf32>
    %cst_59 = arith.constant 1.000000e+00 : f32
    %177 = vector.broadcast %cst_59 : f32 to vector<16x128xf32>
    %178 = arith.addf %177, %176 : vector<16x128xf32>
    %179 = arith.divf %177, %178 : vector<16x128xf32>
    %180 = arith.mulf %174, %179 : vector<16x128xf32>
    %c0_60 = arith.constant 0 : index
    %c0_61 = arith.constant 0 : index
    %181 = vector.load %arg14[%c0_60, %c0_61] : memref<1x128xf32, #tpu.memory_space<vmem>>, vector<1x128xf32>
    %c0_i32_62 = arith.constant 0 : i32
    %182 = vector.broadcast %c0_i32_62 : i32 to vector<16x1xi32>
    %183 = arith.cmpi eq, %2, %182 : vector<16x1xi32>
    %c1_i32_63 = arith.constant 1 : i32
    %184 = tpu.dynamic_rotate %180 by %c1_i32_63 dim 0 : vector<16x128xf32>, i32 -> vector<16x128xf32>
    %cst_64 = arith.constant 0.000000e+00 : f32
    %185 = vector.shape_cast %183 : vector<16x1xi1> to vector<16x1xi1>
    %186 = vector.broadcast %185 : vector<16x1xi1> to vector<16x128xi1>
    %187 = vector.broadcast %cst_64 : f32 to vector<16x128xf32>
    %188 = arith.select %186, %187, %184 : vector<16x128xi1>, vector<16x128xf32>
    %c15_i32_65 = arith.constant 15 : i32
    %189 = vector.broadcast %c15_i32_65 : i32 to vector<16x1xi32>
    %190 = arith.cmpi eq, %2, %189 : vector<16x1xi32>
    %c15_i32_66 = arith.constant 15 : i32
    %191 = tpu.dynamic_rotate %180 by %c15_i32_66 dim 0 : vector<16x128xf32>, i32 -> vector<16x128xf32>
    %cst_67 = arith.constant 0.000000e+00 : f32
    %192 = vector.shape_cast %190 : vector<16x1xi1> to vector<16x1xi1>
    %193 = vector.broadcast %192 : vector<16x1xi1> to vector<16x128xi1>
    %194 = vector.broadcast %cst_67 : f32 to vector<16x128xf32>
    %195 = arith.select %193, %194, %191 : vector<16x128xi1>, vector<16x128xf32>
    %196 = tpu.concatenate %188, %180, %195 in 1 : vector<16x128xf32>, vector<16x128xf32>, vector<16x128xf32> -> vector<16x384xf32>
    %197 = arith.truncf %196 : vector<16x384xf32> to vector<16x384xbf16>
    %c0_68 = arith.constant 0 : index
    %c0_69 = arith.constant 0 : index
    %198 = vector.load %arg13[%c0_68, %c0_69] : memref<384x128xbf16, #tpu.memory_space<vmem>>, vector<384x128xbf16>
    %cst_70 = arith.constant dense<0.000000e+00> : vector<16x128xf32>
    %199 = tpu.matmul %197, %198, %cst_70 {dimension_numbers = #tpu.dot_dimension_numbers<[1], [0], [0], [1], [0, 0, 1, 1], [], []>} : vector<16x384xbf16>, vector<384x128xbf16>, vector<16x128xf32> -> vector<16x128xf32>
    %200 = vector.broadcast %181 : vector<1x128xf32> to vector<16x128xf32>
    %201 = arith.addf %199, %200 : vector<16x128xf32>
    %202 = arith.truncf %1 : vector<16x64xf32> to vector<16x64xbf16>
    %c0_71 = arith.constant 0 : index
    %c0_72 = arith.constant 0 : index
    %203 = vector.load %arg15[%c0_71, %c0_72] : memref<64x128xbf16, #tpu.memory_space<vmem>>, vector<64x128xbf16>
    %cst_73 = arith.constant dense<0.000000e+00> : vector<16x128xf32>
    %204 = tpu.matmul %202, %203, %cst_73 {dimension_numbers = #tpu.dot_dimension_numbers<[1], [0], [0], [1], [0, 0, 1, 1], [], []>} : vector<16x64xbf16>, vector<64x128xbf16>, vector<16x128xf32> -> vector<16x128xf32>
    %c0_74 = arith.constant 0 : index
    %c0_75 = arith.constant 0 : index
    %205 = vector.load %arg16[%c0_74, %c0_75] : memref<1x128xf32, #tpu.memory_space<vmem>>, vector<1x128xf32>
    %206 = vector.broadcast %205 : vector<1x128xf32> to vector<16x128xf32>
    %207 = arith.addf %204, %206 : vector<16x128xf32>
    %208 = arith.addf %207, %201 : vector<16x128xf32>
    %cst_76 = arith.constant 0.707106769 : f32
    %209 = vector.broadcast %cst_76 : f32 to vector<16x128xf32>
    %210 = arith.mulf %208, %209 : vector<16x128xf32>
    %c0_77 = arith.constant 0 : index
    %c0_78 = arith.constant 0 : index
    %c0_79 = arith.constant 0 : index
    %211 = vector.load %arg17[%c0_77, %c0_78, %c0_79] : memref<1x16x128xf32, #tpu.memory_space<vmem>>, vector<1x16x128xf32>
    %212 = vector.shape_cast %211 : vector<1x16x128xf32> to vector<16x128xf32>
    %213 = vector.shape_cast %210 : vector<16x128xf32> to vector<1x16x128xf32>
    tpu.vector_store %arg17[%c0_77, %c0_78, %c0_79], %213 {strides = array<i32>} : memref<1x16x128xf32, #tpu.memory_space<vmem>>, vector<1x16x128xf32>,
    return
  }
  func.func @transform_0(%arg0: i32) -> (i32, i32, i32) {
    %c0_i32 = arith.constant 0 : i32
    %c0_i32_0 = arith.constant 0 : i32
    %c0_i32_1 = arith.constant 0 : i32
    return %arg0, %c0_i32, %c0_i32_0 : i32, i32, i32
  }
  func.func @transform_1(%arg0: i32) -> (i32, i32, i32) {
    %c0_i32 = arith.constant 0 : i32
    %c0_i32_0 = arith.constant 0 : i32
    %c0_i32_1 = arith.constant 0 : i32
    return %arg0, %c0_i32, %c0_i32_0 : i32, i32, i32
  }
  func.func @transform_2(%arg0: i32) -> (i32, i32) {
    %c0_i32 = arith.constant 0 : i32
    %c0_i32_0 = arith.constant 0 : i32
    %c0_i32_1 = arith.constant 0 : i32
    return %c0_i32, %c0_i32_0 : i32, i32
  }
  func.func @transform_3(%arg0: i32) -> (i32, i32) {
    %c0_i32 = arith.constant 0 : i32
    %c0_i32_0 = arith.constant 0 : i32
    %c0_i32_1 = arith.constant 0 : i32
    return %c0_i32, %c0_i32_0 : i32, i32
  }
  func.func @transform_4(%arg0: i32) -> (i32, i32) {
    %c0_i32 = arith.constant 0 : i32
    %c0_i32_0 = arith.constant 0 : i32
    %c0_i32_1 = arith.constant 0 : i32
    return %c0_i32, %c0_i32_0 : i32, i32
  }
  func.func @transform_5(%arg0: i32) -> (i32, i32) {
    %c0_i32 = arith.constant 0 : i32
    %c0_i32_0 = arith.constant 0 : i32
    %c0_i32_1 = arith.constant 0 : i32
    return %c0_i32, %c0_i32_0 : i32, i32
  }
  func.func @transform_6(%arg0: i32) -> (i32, i32) {
    %c0_i32 = arith.constant 0 : i32
    %c0_i32_0 = arith.constant 0 : i32
    %c0_i32_1 = arith.constant 0 : i32
    return %c0_i32, %c0_i32_0 : i32, i32
  }
  func.func @transform_7(%arg0: i32) -> (i32, i32) {
    %c0_i32 = arith.constant 0 : i32
    %c0_i32_0 = arith.constant 0 : i32
    %c0_i32_1 = arith.constant 0 : i32
    return %c0_i32, %c0_i32_0 : i32, i32
  }
  func.func @transform_8(%arg0: i32) -> (i32, i32) {
    %c0_i32 = arith.constant 0 : i32
    %c0_i32_0 = arith.constant 0 : i32
    %c0_i32_1 = arith.constant 0 : i32
    return %c0_i32, %c0_i32_0 : i32, i32
  }
  func.func @transform_9(%arg0: i32) -> (i32, i32) {
    %c0_i32 = arith.constant 0 : i32
    %c0_i32_0 = arith.constant 0 : i32
    %c0_i32_1 = arith.constant 0 : i32
    return %c0_i32, %c0_i32_0 : i32, i32
  }
  func.func @transform_10(%arg0: i32) -> (i32, i32) {
    %c0_i32 = arith.constant 0 : i32
    %c0_i32_0 = arith.constant 0 : i32
    %c0_i32_1 = arith.constant 0 : i32
    return %c0_i32, %c0_i32_0 : i32, i32
  }
  func.func @transform_11(%arg0: i32) -> (i32, i32) {
    %c0_i32 = arith.constant 0 : i32
    %c0_i32_0 = arith.constant 0 : i32
    %c0_i32_1 = arith.constant 0 : i32
    return %c0_i32, %c0_i32_0 : i32, i32
  }
  func.func @transform_12(%arg0: i32) -> (i32, i32) {
    %c0_i32 = arith.constant 0 : i32
    %c0_i32_0 = arith.constant 0 : i32
    %c0_i32_1 = arith.constant 0 : i32
    return %c0_i32, %c0_i32_0 : i32, i32
  }
  func.func @transform_13(%arg0: i32) -> (i32, i32) {
    %c0_i32 = arith.constant 0 : i32
    %c0_i32_0 = arith.constant 0 : i32
    %c0_i32_1 = arith.constant 0 : i32
    return %c0_i32, %c0_i32_0 : i32, i32
  }
  func.func @transform_14(%arg0: i32) -> (i32, i32) {
    %c0_i32 = arith.constant 0 : i32
    %c0_i32_0 = arith.constant 0 : i32
    %c0_i32_1 = arith.constant 0 : i32
    return %c0_i32, %c0_i32_0 : i32, i32
  }
  func.func @transform_15(%arg0: i32) -> (i32, i32) {
    %c0_i32 = arith.constant 0 : i32
    %c0_i32_0 = arith.constant 0 : i32
    %c0_i32_1 = arith.constant 0 : i32
    return %c0_i32, %c0_i32_0 : i32, i32
  }
  func.func @transform_16(%arg0: i32) -> (i32, i32, i32) {
    %c0_i32 = arith.constant 0 : i32
    %c0_i32_0 = arith.constant 0 : i32
    %c0_i32_1 = arith.constant 0 : i32
    return %arg0, %c0_i32, %c0_i32_0 : i32, i32, i32
  }
}

</mosaic_0001>

<llo_original>
// kernel: resnet_block_biggan.1
$region0: #{resnet_block_biggan.1}
  #allocation0 [shape = 'u32[]', space=smem, size = 0x4, offset = 0x4, fixed_abs, tag = 'smem constant byte address 0x4 - core index']
  #allocation1 [shape = 'u32[144,128]{1,0:T(1,128)}', space=vmem, size = 0x12000, scoped, tag = 'internal scratch']
  %s0 = inlined_call_operand.vmem [shape: f32[2,16,64], index: 0, kind: input, shape index: {}]
  %s1 = inlined_call_operand.vmem [shape: f32[2,1,32], index: 1, kind: input, shape index: {}]
  %s2 = inlined_call_operand.vmem [shape: f32[1,64], index: 2, kind: input, shape index: {}]
  %s3 = inlined_call_operand.vmem [shape: f32[1,64], index: 3, kind: input, shape index: {}]
  %s4 = inlined_call_operand.vmem [shape: f32[2,64], index: 4, kind: input, shape index: {}]
  %s5 = inlined_call_operand.vmem [shape: bf16[192,128], index: 5, kind: input, shape index: {}]
  %s6 = inlined_call_operand.vmem [shape: f32[1,128], index: 6, kind: input, shape index: {}]
  %s7 = inlined_call_operand.vmem [shape: bf16[32,128], index: 7, kind: input, shape index: {}]
  %s8 = inlined_call_operand.vmem [shape: f32[1,128], index: 8, kind: input, shape index: {}]
  %s9 = inlined_call_operand.vmem [shape: f32[1,128], index: 9, kind: input, shape index: {}]
  %s10 = inlined_call_operand.vmem [shape: f32[1,128], index: 10, kind: input, shape index: {}]
  %s11 = inlined_call_operand.vmem [shape: f32[2,128], index: 11, kind: input, shape index: {}]
  %s12 = inlined_call_operand.vmem [shape: bf16[384,128], index: 12, kind: input, shape index: {}]
  %s13 = inlined_call_operand.vmem [shape: f32[1,128], index: 13, kind: input, shape index: {}]
  %s14 = inlined_call_operand.vmem [shape: bf16[64,128], index: 14, kind: input, shape index: {}]
  %s15 = inlined_call_operand.vmem [shape: f32[1,128], index: 15, kind: input, shape index: {}]
  %s16 = inlined_call_operand.vmem [shape: f32[2,16,128], index: 16, kind: output, shape index: {}]
  %s17 = sld [smem:[#allocation0]]
  $region97: #{resnet_block_biggan.1} parent=0
    _
  %s19 = ssub.s32 1, %s17
  %s20 = scalar_select 0, %s19, %s17
  loop: start=0, step=1, limit=4
  $region2: #{resnet_block_biggan.1} parent=0 // loop_pre_header
    _
  $region3: #{resnet_block_biggan.1} parent=0 // loop_header
    %s22 = sphi 0, %s26
    %p23 = scmp.ge.s32.totalorder %s22, 4
    %s32 = sphi 0, %s34
    %s35 = sphi 0, %s32
    %s36 = sphi 0, %s35
    %s52 = sphi 0, %s36
    %s58 = sphi 0, %s60
    %s61 = sphi 0, %s58
    %s62 = sphi 0, %s61
    %s78 = sphi 0, %s62
    %s82 = sphi 0, %s82
    %s84 = sphi 0, %s82
    %s85 = sphi 0, %s84
    %s99 = sphi 0, %s85
    %s103 = sphi 0, %s103
    %s105 = sphi 0, %s103
    %s106 = sphi 0, %s105
    %s120 = sphi 0, %s106
    %s124 = sphi 0, %s124
    %s126 = sphi 0, %s124
    %s127 = sphi 0, %s126
    %s141 = sphi 0, %s127
    %s145 = sphi 0, %s145
    %s147 = sphi 0, %s145
    %s148 = sphi 0, %s147
    %s162 = sphi 0, %s148
    %s166 = sphi 0, %s166
    %s168 = sphi 0, %s166
    %s169 = sphi 0, %s168
    %s183 = sphi 0, %s169
    %s187 = sphi 0, %s187
    %s189 = sphi 0, %s187
    %s190 = sphi 0, %s189
    %s204 = sphi 0, %s190
    %s208 = sphi 0, %s208
    %s210 = sphi 0, %s208
    %s211 = sphi 0, %s210
    %s225 = sphi 0, %s211
    %s229 = sphi 0, %s229
    %s231 = sphi 0, %s229
    %s232 = sphi 0, %s231
    %s246 = sphi 0, %s232
    %s250 = sphi 0, %s250
    %s252 = sphi 0, %s250
    %s253 = sphi 0, %s252
    %s267 = sphi 0, %s253
    %s271 = sphi 0, %s271
    %s273 = sphi 0, %s271
    %s274 = sphi 0, %s273
    %s288 = sphi 0, %s274
    %s292 = sphi 0, %s292
    %s294 = sphi 0, %s292
    %s295 = sphi 0, %s294
    %s309 = sphi 0, %s295
    %s313 = sphi 0, %s313
    %s315 = sphi 0, %s313
    %s316 = sphi 0, %s315
    %s330 = sphi 0, %s316
    %s334 = sphi 0, %s334
    %s336 = sphi 0, %s334
    %s337 = sphi 0, %s336
    %s351 = sphi 0, %s337
    %s355 = sphi 0, %s355
    %s357 = sphi 0, %s355
    %s358 = sphi 0, %s357
    %s372 = sphi 0, %s358
    %s378 = sphi 0, %s380
    %s381 = sphi 0, %s378
    %s382 = sphi 0, %s381
    %s398 = sphi 0, %s382
  $region4: #{resnet_block_biggan.1} parent=0 // loop_header_branch
    %25 = sbr.rel (%p23) target = $region8
  $region5: #{resnet_block_biggan.1} parent=0 // loop_body
    %s27 = ssub.s32 %s22, 1
    %s28 = ssub.s32 %s22, 2
    %s29 = sadd.s32 %s22, 1
    %s30 = ssub.s32 %s22, %s29
    %p31 = scmp.eq.s32.totalorder %s30, 0
    %s33 = sadd.s32 %s32, 1
    %s34 = scalar_select %p31, %s32, %s33
    %p37 = pneg %p31
    %p38 = scmp.eq.s32.totalorder %s22, 1
    %p39 = por %p37, %p38
    %p40 = scmp.ne.s32.totalorder %s32, %s35
    %p41 = scmp.eq.s32.totalorder %s22, 0
    %p42 = por %p40, %p41
    %p43 = scmp.ne.s32.totalorder %s32, %s35
    %p44 = scmp.eq.s32.totalorder %s27, 1
    %p45 = por %p43, %p44
    %p46 = scmp.ne.s32.totalorder %s35, %s36
    %p47 = scmp.eq.s32.totalorder %s27, 0
    %p48 = por %p46, %p47
    %p49 = scmp.ne.s32.totalorder %s35, %s36
    %p50 = scmp.eq.s32.totalorder %s28, 1
    %p51 = por %p49, %p50
    %p53 = scmp.ne.s32.totalorder %s36, %s52
    %p54 = scmp.eq.s32.totalorder %s28, 0
    %p55 = por %p53, %p54
    %s56 = ssub.s32 %s22, %s29
    %p57 = scmp.eq.s32.totalorder %s56, 0
    %s59 = sadd.s32 %s58, 1
    %s60 = scalar_select %p57, %s58, %s59
    %p63 = pneg %p57
    %p64 = scmp.eq.s32.totalorder %s22, 1
    %p65 = por %p63, %p64
    %p66 = scmp.ne.s32.totalorder %s58, %s61
    %p67 = scmp.eq.s32.totalorder %s22, 0
    %p68 = por %p66, %p67
    %p69 = scmp.ne.s32.totalorder %s58, %s61
    %p70 = scmp.eq.s32.totalorder %s27, 1
    %p71 = por %p69, %p70
    %p72 = scmp.ne.s32.totalorder %s61, %s62
    %p73 = scmp.eq.s32.totalorder %s27, 0
    %p74 = por %p72, %p73
    %p75 = scmp.ne.s32.totalorder %s61, %s62
    %p76 = scmp.eq.s32.totalorder %s28, 1
    %p77 = por %p75, %p76
    %p79 = scmp.ne.s32.totalorder %s62, %s78
    %p80 = scmp.eq.s32.totalorder %s28, 0
    %p81 = por %p79, %p80
    %s83 = sadd.s32 %s82, 1
    %p86 = scmp.eq.s32.totalorder %s22, 1
    %p87 = scmp.ne.s32.totalorder %s82, %s84
    %p88 = scmp.eq.s32.totalorder %s22, 0
    %p89 = por %p87, %p88
    %p90 = scmp.ne.s32.totalorder %s82, %s84
    %p91 = scmp.eq.s32.totalorder %s27, 1
    %p92 = por %p90, %p91
    %p93 = scmp.ne.s32.totalorder %s84, %s85
    %p94 = scmp.eq.s32.totalorder %s27, 0
    %p95 = por %p93, %p94
    %p96 = scmp.ne.s32.totalorder %s84, %s85
    %p97 = scmp.eq.s32.totalorder %s28, 1
    %p98 = por %p96, %p97
    %p100 = scmp.ne.s32.totalorder %s85, %s99
    %p101 = scmp.eq.s32.totalorder %s28, 0
    %p102 = por %p100, %p101
    %s104 = sadd.s32 %s103, 1
    %p107 = scmp.eq.s32.totalorder %s22, 1
    %p108 = scmp.ne.s32.totalorder %s103, %s105
    %p109 = scmp.eq.s32.totalorder %s22, 0
    %p110 = por %p108, %p109
    %p111 = scmp.ne.s32.totalorder %s103, %s105
    %p112 = scmp.eq.s32.totalorder %s27, 1
    %p113 = por %p111, %p112
    %p114 = scmp.ne.s32.totalorder %s105, %s106
    %p115 = scmp.eq.s32.totalorder %s27, 0
    %p116 = por %p114, %p115
    %p117 = scmp.ne.s32.totalorder %s105, %s106
    %p118 = scmp.eq.s32.totalorder %s28, 1
    %p119 = por %p117, %p118
    %p121 = scmp.ne.s32.totalorder %s106, %s120
    %p122 = scmp.eq.s32.totalorder %s28, 0
    %p123 = por %p121, %p122
    %s125 = sadd.s32 %s124, 1
    %p128 = scmp.eq.s32.totalorder %s22, 1
    %p129 = scmp.ne.s32.totalorder %s124, %s126
    %p130 = scmp.eq.s32.totalorder %s22, 0
    %p131 = por %p129, %p130
    %p132 = scmp.ne.s32.totalorder %s124, %s126
    %p133 = scmp.eq.s32.totalorder %s27, 1
    %p134 = por %p132, %p133
    %p135 = scmp.ne.s32.totalorder %s126, %s127
    %p136 = scmp.eq.s32.totalorder %s27, 0
    %p137 = por %p135, %p136
    %p138 = scmp.ne.s32.totalorder %s126, %s127
    %p139 = scmp.eq.s32.totalorder %s28, 1
    %p140 = por %p138, %p139
    %p142 = scmp.ne.s32.totalorder %s127, %s141
    %p143 = scmp.eq.s32.totalorder %s28, 0
    %p144 = por %p142, %p143
    %s146 = sadd.s32 %s145, 1
    %p149 = scmp.eq.s32.totalorder %s22, 1
    %p150 = scmp.ne.s32.totalorder %s145, %s147
    %p151 = scmp.eq.s32.totalorder %s22, 0
    %p152 = por %p150, %p151
    %p153 = scmp.ne.s32.totalorder %s145, %s147
    %p154 = scmp.eq.s32.totalorder %s27, 1
    %p155 = por %p153, %p154
    %p156 = scmp.ne.s32.totalorder %s147, %s148
    %p157 = scmp.eq.s32.totalorder %s27, 0
    %p158 = por %p156, %p157
    %p159 = scmp.ne.s32.totalorder %s147, %s148
    %p160 = scmp.eq.s32.totalorder %s28, 1
    %p161 = por %p159, %p160
    %p163 = scmp.ne.s32.totalorder %s148, %s162
    %p164 = scmp.eq.s32.totalorder %s28, 0
    %p165 = por %p163, %p164
    %s167 = sadd.s32 %s166, 1
    %p170 = scmp.eq.s32.totalorder %s22, 1
    %p171 = scmp.ne.s32.totalorder %s166, %s168
    %p172 = scmp.eq.s32.totalorder %s22, 0
    %p173 = por %p171, %p172
    %p174 = scmp.ne.s32.totalorder %s166, %s168
    %p175 = scmp.eq.s32.totalorder %s27, 1
    %p176 = por %p174, %p175
    %p177 = scmp.ne.s32.totalorder %s168, %s169
    %p178 = scmp.eq.s32.totalorder %s27, 0
    %p179 = por %p177, %p178
    %p180 = scmp.ne.s32.totalorder %s168, %s169
    %p181 = scmp.eq.s32.totalorder %s28, 1
    %p182 = por %p180, %p181
    %p184 = scmp.ne.s32.totalorder %s169, %s183
    %p185 = scmp.eq.s32.totalorder %s28, 0
    %p186 = por %p184, %p185
    %s188 = sadd.s32 %s187, 1
    %p191 = scmp.eq.s32.totalorder %s22, 1
    %p192 = scmp.ne.s32.totalorder %s187, %s189
    %p193 = scmp.eq.s32.totalorder %s22, 0
    %p194 = por %p192, %p193
    %p195 = scmp.ne.s32.totalorder %s187, %s189
    %p196 = scmp.eq.s32.totalorder %s27, 1
    %p197 = por %p195, %p196
    %p198 = scmp.ne.s32.totalorder %s189, %s190
    %p199 = scmp.eq.s32.totalorder %s27, 0
    %p200 = por %p198, %p199
    %p201 = scmp.ne.s32.totalorder %s189, %s190
    %p202 = scmp.eq.s32.totalorder %s28, 1
    %p203 = por %p201, %p202
    %p205 = scmp.ne.s32.totalorder %s190, %s204
    %p206 = scmp.eq.s32.totalorder %s28, 0
    %p207 = por %p205, %p206
    %s209 = sadd.s32 %s208, 1
    %p212 = scmp.eq.s32.totalorder %s22, 1
    %p213 = scmp.ne.s32.totalorder %s208, %s210
    %p214 = scmp.eq.s32.totalorder %s22, 0
    %p215 = por %p213, %p214
    %p216 = scmp.ne.s32.totalorder %s208, %s210
    %p217 = scmp.eq.s32.totalorder %s27, 1
    %p218 = por %p216, %p217
    %p219 = scmp.ne.s32.totalorder %s210, %s211
    %p220 = scmp.eq.s32.totalorder %s27, 0
    %p221 = por %p219, %p220
    %p222 = scmp.ne.s32.totalorder %s210, %s211
    %p223 = scmp.eq.s32.totalorder %s28, 1
    %p224 = por %p222, %p223
    %p226 = scmp.ne.s32.totalorder %s211, %s225
    %p227 = scmp.eq.s32.totalorder %s28, 0
    %p228 = por %p226, %p227
    %s230 = sadd.s32 %s229, 1
    %p233 = scmp.eq.s32.totalorder %s22, 1
    %p234 = scmp.ne.s32.totalorder %s229, %s231
    %p235 = scmp.eq.s32.totalorder %s22, 0
    %p236 = por %p234, %p235
    %p237 = scmp.ne.s32.totalorder %s229, %s231
    %p238 = scmp.eq.s32.totalorder %s27, 1
    %p239 = por %p237, %p238
    %p240 = scmp.ne.s32.totalorder %s231, %s232
    %p241 = scmp.eq.s32.totalorder %s27, 0
    %p242 = por %p240, %p241
    %p243 = scmp.ne.s32.totalorder %s231, %s232
    %p244 = scmp.eq.s32.totalorder %s28, 1
    %p245 = por %p243, %p244
    %p247 = scmp.ne.s32.totalorder %s232, %s246
    %p248 = scmp.eq.s32.totalorder %s28, 0
    %p249 = por %p247, %p248
    %s251 = sadd.s32 %s250, 1
    %p254 = scmp.eq.s32.totalorder %s22, 1
    %p255 = scmp.ne.s32.totalorder %s250, %s252
    %p256 = scmp.eq.s32.totalorder %s22, 0
    %p257 = por %p255, %p256
    %p258 = scmp.ne.s32.totalorder %s250, %s252
    %p259 = scmp.eq.s32.totalorder %s27, 1
    %p260 = por %p258, %p259
    %p261 = scmp.ne.s32.totalorder %s252, %s253
    %p262 = scmp.eq.s32.totalorder %s27, 0
    %p263 = por %p261, %p262
    %p264 = scmp.ne.s32.totalorder %s252, %s253
    %p265 = scmp.eq.s32.totalorder %s28, 1
    %p266 = por %p264, %p265
    %p268 = scmp.ne.s32.totalorder %s253, %s267
    %p269 = scmp.eq.s32.totalorder %s28, 0
    %p270 = por %p268, %p269
    %s272 = sadd.s32 %s271, 1
    %p275 = scmp.eq.s32.totalorder %s22, 1
    %p276 = scmp.ne.s32.totalorder %s271, %s273
    %p277 = scmp.eq.s32.totalorder %s22, 0
    %p278 = por %p276, %p277
    %p279 = scmp.ne.s32.totalorder %s271, %s273
    %p280 = scmp.eq.s32.totalorder %s27, 1
    %p281 = por %p279, %p280
    %p282 = scmp.ne.s32.totalorder %s273, %s274
    %p283 = scmp.eq.s32.totalorder %s27, 0
    %p284 = por %p282, %p283
    %p285 = scmp.ne.s32.totalorder %s273, %s274
    %p286 = scmp.eq.s32.totalorder %s28, 1
    %p287 = por %p285, %p286
    %p289 = scmp.ne.s32.totalorder %s274, %s288
    %p290 = scmp.eq.s32.totalorder %s28, 0
    %p291 = por %p289, %p290
    %s293 = sadd.s32 %s292, 1
    %p296 = scmp.eq.s32.totalorder %s22, 1
    %p297 = scmp.ne.s32.totalorder %s292, %s294
    %p298 = scmp.eq.s32.totalorder %s22, 0
    %p299 = por %p297, %p298
    %p300 = scmp.ne.s32.totalorder %s292, %s294
    %p301 = scmp.eq.s32.totalorder %s27, 1
    %p302 = por %p300, %p301
    %p303 = scmp.ne.s32.totalorder %s294, %s295
    %p304 = scmp.eq.s32.totalorder %s27, 0
    %p305 = por %p303, %p304
    %p306 = scmp.ne.s32.totalorder %s294, %s295
    %p307 = scmp.eq.s32.totalorder %s28, 1
    %p308 = por %p306, %p307
    %p310 = scmp.ne.s32.totalorder %s295, %s309
    %p311 = scmp.eq.s32.totalorder %s28, 0
    %p312 = por %p310, %p311
    %s314 = sadd.s32 %s313, 1
    %p317 = scmp.eq.s32.totalorder %s22, 1
    %p318 = scmp.ne.s32.totalorder %s313, %s315
    %p319 = scmp.eq.s32.totalorder %s22, 0
    %p320 = por %p318, %p319
    %p321 = scmp.ne.s32.totalorder %s313, %s315
    %p322 = scmp.eq.s32.totalorder %s27, 1
    %p323 = por %p321, %p322
    %p324 = scmp.ne.s32.totalorder %s315, %s316
    %p325 = scmp.eq.s32.totalorder %s27, 0
    %p326 = por %p324, %p325
    %p327 = scmp.ne.s32.totalorder %s315, %s316
    %p328 = scmp.eq.s32.totalorder %s28, 1
    %p329 = por %p327, %p328
    %p331 = scmp.ne.s32.totalorder %s316, %s330
    %p332 = scmp.eq.s32.totalorder %s28, 0
    %p333 = por %p331, %p332
    %s335 = sadd.s32 %s334, 1
    %p338 = scmp.eq.s32.totalorder %s22, 1
    %p339 = scmp.ne.s32.totalorder %s334, %s336
    %p340 = scmp.eq.s32.totalorder %s22, 0
    %p341 = por %p339, %p340
    %p342 = scmp.ne.s32.totalorder %s334, %s336
    %p343 = scmp.eq.s32.totalorder %s27, 1
    %p344 = por %p342, %p343
    %p345 = scmp.ne.s32.totalorder %s336, %s337
    %p346 = scmp.eq.s32.totalorder %s27, 0
    %p347 = por %p345, %p346
    %p348 = scmp.ne.s32.totalorder %s336, %s337
    %p349 = scmp.eq.s32.totalorder %s28, 1
    %p350 = por %p348, %p349
    %p352 = scmp.ne.s32.totalorder %s337, %s351
    %p353 = scmp.eq.s32.totalorder %s28, 0
    %p354 = por %p352, %p353
    %s356 = sadd.s32 %s355, 1
    %p359 = scmp.eq.s32.totalorder %s22, 1
    %p360 = scmp.ne.s32.totalorder %s355, %s357
    %p361 = scmp.eq.s32.totalorder %s22, 0
    %p362 = por %p360, %p361
    %p363 = scmp.ne.s32.totalorder %s355, %s357
    %p364 = scmp.eq.s32.totalorder %s27, 1
    %p365 = por %p363, %p364
    %p366 = scmp.ne.s32.totalorder %s357, %s358
    %p367 = scmp.eq.s32.totalorder %s27, 0
    %p368 = por %p366, %p367
    %p369 = scmp.ne.s32.totalorder %s357, %s358
    %p370 = scmp.eq.s32.totalorder %s28, 1
    %p371 = por %p369, %p370
    %p373 = scmp.ne.s32.totalorder %s358, %s372
    %p374 = scmp.eq.s32.totalorder %s28, 0
    %p375 = por %p373, %p374
    %s376 = ssub.s32 %s22, %s29
    %p377 = scmp.eq.s32.totalorder %s376, 0
    %s379 = sadd.s32 %s378, 1
    %s380 = scalar_select %p377, %s378, %s379
    %p383 = pneg %p377
    %p384 = scmp.eq.s32.totalorder %s22, 1
    %p385 = por %p383, %p384
    %p386 = scmp.ne.s32.totalorder %s378, %s381
    %p387 = scmp.eq.s32.totalorder %s22, 0
    %p388 = por %p386, %p387
    %p389 = scmp.ne.s32.totalorder %s378, %s381
    %p390 = scmp.eq.s32.totalorder %s27, 1
    %p391 = por %p389, %p390
    %p392 = scmp.ne.s32.totalorder %s381, %s382
    %p393 = scmp.eq.s32.totalorder %s27, 0
    %p394 = por %p392, %p393
    %p395 = scmp.ne.s32.totalorder %s381, %s382
    %p396 = scmp.eq.s32.totalorder %s28, 1
    %p397 = por %p395, %p396
    %p399 = scmp.ne.s32.totalorder %s382, %s398
    %p400 = scmp.eq.s32.totalorder %s28, 0
    %p401 = por %p399, %p400
    %p402 = scmp.le.s32.totalorder 1, %s22
    %p403 = scmp.lt.s32.totalorder %s22, 3
    %p404 = pnand %p402, %p403
    %p405 = pneg %p404
    // Predicated region
    $region9: #{resnet_block_biggan.1} parent=5 // pred_check
      _
    $region10: #{resnet_block_biggan.1} parent=5 // pred_check_branch
      %407 = sbr.rel (%p404) target = $region12
    $region11: #{resnet_block_biggan.1} parent=5 // pred_region
      %s408 = ssub.s32 %s22, 1
      // Predicated region
      $region13: #{resnet_block_biggan.1} parent=11 // pred_check
        %p409 = pneg %p95
      $region14: #{resnet_block_biggan.1} parent=11 // pred_check_branch
        %411 = sbr.rel (%p409) target = $region16
      $region15: #{resnet_block_biggan.1} parent=11 // pred_region
        _
      $region16: #{resnet_block_biggan.1} parent=11 // pred_fallthru
        _
      // Predicated region
      $region17: #{resnet_block_biggan.1} parent=11 // pred_check
        %p412 = pneg %p116
      $region18: #{resnet_block_biggan.1} parent=11 // pred_check_branch
        %414 = sbr.rel (%p412) target = $region20
      $region19: #{resnet_block_biggan.1} parent=11 // pred_region
        _
      $region20: #{resnet_block_biggan.1} parent=11 // pred_fallthru
        _
      // Predicated region
      $region21: #{resnet_block_biggan.1} parent=11 // pred_check
        %p415 = pneg %p137
      $region22: #{resnet_block_biggan.1} parent=11 // pred_check_branch
        %417 = sbr.rel (%p415) target = $region24
      $region23: #{resnet_block_biggan.1} parent=11 // pred_region
        _
      $region24: #{resnet_block_biggan.1} parent=11 // pred_fallthru
        _
      // Predicated region
      $region25: #{resnet_block_biggan.1} parent=11 // pred_check
        %p418 = pneg %p158
      $region26: #{resnet_block_biggan.1} parent=11 // pred_check_branch
        %420 = sbr.rel (%p418) target = $region28
      $region27: #{resnet_block_biggan.1} parent=11 // pred_region
        _
      $region28: #{resnet_block_biggan.1} parent=11 // pred_fallthru
        _
      // Predicated region
      $region29: #{resnet_block_biggan.1} parent=11 // pred_check
        %p421 = pneg %p179
      $region30: #{resnet_block_biggan.1} parent=11 // pred_check_branch
        %423 = sbr.rel (%p421) target = $region32
      $region31: #{resnet_block_biggan.1} parent=11 // pred_region
        _
      $region32: #{resnet_block_biggan.1} parent=11 // pred_fallthru
        _
      // Predicated region
      $region33: #{resnet_block_biggan.1} parent=11 // pred_check
        %p424 = pneg %p200
      $region34: #{resnet_block_biggan.1} parent=11 // pred_check_branch
        %426 = sbr.rel (%p424) target = $region36
      $region35: #{resnet_block_biggan.1} parent=11 // pred_region
        _
      $region36: #{resnet_block_biggan.1} parent=11 // pred_fallthru
        _
      // Predicated region
      $region37: #{resnet_block_biggan.1} parent=11 // pred_check
        %p427 = pneg %p221
      $region38: #{resnet_block_biggan.1} parent=11 // pred_check_branch
        %429 = sbr.rel (%p427) target = $region40
      $region39: #{resnet_block_biggan.1} parent=11 // pred_region
        _
      $region40: #{resnet_block_biggan.1} parent=11 // pred_fallthru
        _
      // Predicated region
      $region41: #{resnet_block_biggan.1} parent=11 // pred_check
        %p430 = pneg %p242
      $region42: #{resnet_block_biggan.1} parent=11 // pred_check_branch
        %432 = sbr.rel (%p430) target = $region44
      $region43: #{resnet_block_biggan.1} parent=11 // pred_region
        _
      $region44: #{resnet_block_biggan.1} parent=11 // pred_fallthru
        _
      // Predicated region
      $region45: #{resnet_block_biggan.1} parent=11 // pred_check
        %p433 = pneg %p263
      $region46: #{resnet_block_biggan.1} parent=11 // pred_check_branch
        %435 = sbr.rel (%p433) target = $region48
      $region47: #{resnet_block_biggan.1} parent=11 // pred_region
        _
      $region48: #{resnet_block_biggan.1} parent=11 // pred_fallthru
        _
      // Predicated region
      $region49: #{resnet_block_biggan.1} parent=11 // pred_check
        %p436 = pneg %p284
      $region50: #{resnet_block_biggan.1} parent=11 // pred_check_branch
        %438 = sbr.rel (%p436) target = $region52
      $region51: #{resnet_block_biggan.1} parent=11 // pred_region
        _
      $region52: #{resnet_block_biggan.1} parent=11 // pred_fallthru
        _
      // Predicated region
      $region53: #{resnet_block_biggan.1} parent=11 // pred_check
        %p439 = pneg %p305
      $region54: #{resnet_block_biggan.1} parent=11 // pred_check_branch
        %441 = sbr.rel (%p439) target = $region56
      $region55: #{resnet_block_biggan.1} parent=11 // pred_region
        _
      $region56: #{resnet_block_biggan.1} parent=11 // pred_fallthru
        _
      // Predicated region
      $region57: #{resnet_block_biggan.1} parent=11 // pred_check
        %p442 = pneg %p326
      $region58: #{resnet_block_biggan.1} parent=11 // pred_check_branch
        %444 = sbr.rel (%p442) target = $region60
      $region59: #{resnet_block_biggan.1} parent=11 // pred_region
        _
      $region60: #{resnet_block_biggan.1} parent=11 // pred_fallthru
        _
      // Predicated region
      $region61: #{resnet_block_biggan.1} parent=11 // pred_check
        %p445 = pneg %p347
      $region62: #{resnet_block_biggan.1} parent=11 // pred_check_branch
        %447 = sbr.rel (%p445) target = $region64
      $region63: #{resnet_block_biggan.1} parent=11 // pred_region
        _
      $region64: #{resnet_block_biggan.1} parent=11 // pred_fallthru
        _
      // Predicated region
      $region65: #{resnet_block_biggan.1} parent=11 // pred_check
        %p448 = pneg %p368
      $region66: #{resnet_block_biggan.1} parent=11 // pred_check_branch
        %450 = sbr.rel (%p448) target = $region68
      $region67: #{resnet_block_biggan.1} parent=11 // pred_region
        _
      $region68: #{resnet_block_biggan.1} parent=11 // pred_fallthru
        _
    $region12: #{resnet_block_biggan.1} parent=5 // pred_fallthru
      _
    %p451 = scmp.lt.s32.totalorder %s22, 2
    // Predicated region
    $region69: #{resnet_block_biggan.1} parent=5 // pred_check
      %p452 = pneg %p451
    $region70: #{resnet_block_biggan.1} parent=5 // pred_check_branch
      %454 = sbr.rel (%p452) target = $region72
    $region71: #{resnet_block_biggan.1} parent=5 // pred_region
      // Predicated region
      $region73: #{resnet_block_biggan.1} parent=71 // pred_check
        %p455 = pneg %p42
      $region74: #{resnet_block_biggan.1} parent=71 // pred_check_branch
        %457 = sbr.rel (%p455) target = $region76
      $region75: #{resnet_block_biggan.1} parent=71 // pred_region
        %p458 = scmp.lt.s32.totalorder %s22, 1
        %s459 = scalar_select %p458, %s22, 1
        %s460 = smul.addr %s459, 2
        %s461 = smul.addr %s460, 8
        %s462 = scalar_lea.vmem %s0, %s461
      $region76: #{resnet_block_biggan.1} parent=71 // pred_fallthru
        _
      // Predicated region
      $region77: #{resnet_block_biggan.1} parent=71 // pred_check
        %p463 = pneg %p68
      $region78: #{resnet_block_biggan.1} parent=71 // pred_check_branch
        %465 = sbr.rel (%p463) target = $region80
      $region79: #{resnet_block_biggan.1} parent=71 // pred_region
        %p466 = scmp.lt.s32.totalorder %s22, 1
        %s467 = scalar_select %p466, %s22, 1
        %s468 = scalar_lea.vmem %s1, %s467
      $region80: #{resnet_block_biggan.1} parent=71 // pred_fallthru
        _
    $region72: #{resnet_block_biggan.1} parent=5 // pred_fallthru
      _
    %p469 = scmp.le.s32.totalorder 1, %s22
    %p470 = scmp.lt.s32.totalorder %s22, 3
    %p471 = pnand %p469, %p470
    %p472 = pneg %p471
    // Predicated region
    $region81: #{resnet_block_biggan.1} parent=5 // pred_check
      _
    $region82: #{resnet_block_biggan.1} parent=5 // pred_check_branch
      %474 = sbr.rel (%p471) target = $region84
    $region83: #{resnet_block_biggan.1} parent=5 // pred_region
      %s475 = ssub.s32 %s22, 1
      %p476 = scmp.lt.s32.totalorder %s27, 1
      %s477 = scalar_select %p476, %s27, 1
      %s478 = smul.addr %s477, 2
      %s479 = smul.addr %s478, 8
      %s480 = scalar_lea.vmem %s0, %s479
      %p481 = pneg %p48
      %p482 = pneg %p45
      %p483 = scmp.lt.s32.totalorder %s27, 1
      %s484 = scalar_select %p483, %s27, 1
      %s485 = scalar_lea.vmem %s1, %s484
      %p486 = pneg %p74
      %p487 = pneg %p71
      %p488 = pneg %p95
      %p489 = pneg %p92
      %p490 = pneg %p116
      %p491 = pneg %p113
      %p492 = pneg %p137
      %p493 = pneg %p134
      %p494 = pneg %p158
      %p495 = pneg %p155
      %p496 = pneg %p179
      %p497 = pneg %p176
      %p498 = pneg %p200
      %p499 = pneg %p197
      %p500 = pneg %p221
      %p501 = pneg %p218
      %p502 = pneg %p242
      %p503 = pneg %p239
      %p504 = pneg %p263
      %p505 = pneg %p260
      %p506 = pneg %p284
      %p507 = pneg %p281
      %p508 = pneg %p305
      %p509 = pneg %p302
      %p510 = pneg %p326
      %p511 = pneg %p323
      %p512 = pneg %p347
      %p513 = pneg %p344
      %p514 = pneg %p368
      %p515 = pneg %p365
      %p516 = pneg %p394
      %p517 = pneg %p391
      %p518 = scmp.lt.s32.totalorder %s27, 1
      %s519 = scalar_select %p518, %s27, 1
      %s520 = smul.addr %s519, 2
      %s521 = smul.addr %s520, 8
      %s522 = scalar_lea.vmem %s16, %s521
      %p523 = scmp.lt.s32.totalorder %s27, 1
      %s524 = scalar_select %p523, %s27, 1
      %s525 = smul.addr %s524, 2
      %s526 = smul.addr %s525, 8
      %s527 = scalar_lea.vmem %s0, %s526
      %p528 = scmp.lt.s32.totalorder %s27, 1
      %s529 = scalar_select %p528, %s27, 1
      %s530 = scalar_lea.vmem %s1, %s529
      %p531 = scmp.lt.s32.totalorder %s27, 1
      %s532 = scalar_select %p531, %s27, 1
      %s533 = smul.addr %s532, 2
      %s534 = smul.addr %s533, 8
      %s535 = scalar_lea.vmem %s16, %s534
      %v537 = vld [vmem:[%s527] sm:$0xff]
      %v538 = vld [vmem:[%s527 + $0x8] sm:$0xff]
      %v539 = vlaneseq
      %v540 = vshrl.u32 %v539, 7
      %v541 = vadd.s32 %v540, 8
      %v542 = vld [vmem:[%s2] sm:$0x1]
      %v543 = vld [vmem:[%s3] sm:$0x1]
      %v544 = vld [vmem:[%s4] sm:$0x3]
      %vm545 = vcmask 523264
      %v546 = vsel %vm545, %v537, 0.0
      %v547 = vsel %vm545, %v538, 0.0
      %v548 = vadd.f32 %v546, %v547
      %v549 = vrot.slane %v548, 4
      %v550 = vadd.f32 %v548, %v549
      %v551 = vrot.slane %v550, 2
      %v552 = vadd.f32 %v550, %v551
      %v553 = vrot.slane %v552, 1
      %v554 = vadd.f32 %v552, %v553
      %v555 = vmul.f32 %v537, %v537
      %v556 = vmul.f32 %v538, %v538
      %v557 = vsel %vm545, %v555, 0.0
      %v558 = vsel %vm545, %v556, 0.0
      %v559 = vadd.f32 %v557, %v558
      %v560 = vrot.slane %v559, 4
      %v561 = vadd.f32 %v559, %v560
      %v562 = vrot.slane %v561, 2
      %v563 = vadd.f32 %v561, %v562
      %v564 = vrot.slane %v563, 1
      %v565 = vadd.f32 %v563, %v564
      %v566 = vmul.f32 %v554, %v544
      %vm567 = vcmask 516096
      %v568 = vsel %vm567, %v566, 0.0
      %569 = vadd.xlane.f32.xlu0 %v568
      %v570 = vpop.xlane.xlu0 %569
      %v571 = vrot.slane %v570, 4
      %v572 = vadd.f32 %v570, %v571
      %v573 = vrot.slane %v572, 2
      %v574 = vadd.f32 %v572, %v573
      %v575 = vrot.slane %v574, 1
      %v576 = vadd.f32 %v574, %v575
      %s577 = vtos %v576
      %v578 = vrcp.pop 512.0
      %s579 = vtos %v578
      %s580 = smul.f32 %s577, %s579
      %v581 = vmul.f32 %v565, %v544
      %v582 = vsel %vm567, %v581, 0.0
      %583 = vadd.xlane.f32.xlu0 %v582
      %v584 = vpop.xlane.xlu0 %583
      %v585 = vrot.slane %v584, 4
      %v586 = vadd.f32 %v584, %v585
      %v587 = vrot.slane %v586, 2
      %v588 = vadd.f32 %v586, %v587
      %v589 = vrot.slane %v588, 1
      %v590 = vadd.f32 %v588, %v589
      %s591 = vtos %v590
      %v592 = vrcp.pop 512.0
      %s593 = vtos %v592
      %s594 = smul.f32 %s591, %s593
      %s595 = smul.f32 %s580, %s580
      %s596 = ssub.f32 %s594, %s595
      %s597 = sadd.f32 %s596, 1e-06
      %v598 = vstv %s597
      %v599 = vrsqrt.pop %v598
      %s600 = vtos %v599
      %v601 = vstv %s600
      %v602 = vmul.f32 %v544, %v601
      %v603 = vadd.f32 %v602, 0.0
      %s604 = smul.f32 %s580, %s600
      %v605 = vstv %s604
      %v606 = vmul.f32 %v544, %v605
      %v607 = vadd.f32 %v606, 0.0
      %v609 = vrot.slane %v566, 1
      %v611 = vsel %vm567, %v609, 0.0
      %612 = vadd.xlane.f32.xlu0 %v611
      %v613 = vpop.xlane.xlu0 %612
      %v614 = vrot.slane %v613, 4
      %v615 = vadd.f32 %v613, %v614
      %v616 = vrot.slane %v615, 2
      %v617 = vadd.f32 %v615, %v616
      %v618 = vrot.slane %v617, 1
      %v619 = vadd.f32 %v617, %v618
      %s620 = vtos %v619
      %v621 = vrcp.pop 512.0
      %s622 = vtos %v621
      %s623 = smul.f32 %s620, %s622
      %v625 = vrot.slane %v581, 1
      %v627 = vsel %vm567, %v625, 0.0
      %628 = vadd.xlane.f32.xlu0 %v627
      %v629 = vpop.xlane.xlu0 %628
      %v630 = vrot.slane %v629, 4
      %v631 = vadd.f32 %v629, %v630
      %v632 = vrot.slane %v631, 2
      %v633 = vadd.f32 %v631, %v632
      %v634 = vrot.slane %v633, 1
      %v635 = vadd.f32 %v633, %v634
      %s636 = vtos %v635
      %v637 = vrcp.pop 512.0
      %s638 = vtos %v637
      %s639 = smul.f32 %s636, %s638
      %s640 = smul.f32 %s623, %s623
      %s641 = ssub.f32 %s639, %s640
      %s642 = sadd.f32 %s641, 1e-06
      %v643 = vstv %s642
      %v644 = vrsqrt.pop %v643
      %s645 = vtos %v644
      %v646 = vstv %s645
      %v647 = vmul.f32 %v544, %v646
      %v649 = vrot.slane %v647, 1
      %v651 = vadd.f32 %v603, %v649
      %s652 = smul.f32 %s623, %s645
      %v653 = vstv %s652
      %v654 = vmul.f32 %v544, %v653
      %v656 = vrot.slane %v654, 1
      %v658 = vadd.f32 %v607, %v656
      %v659 = vmul.f32 %v651, %v542
      %v660 = vmul.f32 %v658, %v542
      %v661 = vsub.f32 %v543, %v660
      %v662 = vlaneseq
      %v663 = vshrl.u32 %v662, 7
      %v664 = vsub.s32 0, %v663
      %v665 = vrot.slane %v659, %v664
      %v666 = vmul.f32 %v537, %v665
      %v667 = vmul.f32 %v538, %v665
      %v669 = vlaneseq
      %v670 = vshrl.u32 %v669, 7
      %v671 = vsub.s32 0, %v670
      %v672 = vrot.slane %v661, %v671
      %v674 = vadd.f32 %v666, %v672
      %v675 = vadd.f32 %v667, %v672
      %v676 = vxor.u32 %v674, 2147483648
      %v677 = vxor.u32 %v675, 2147483648
      %v678 = vmul.f32 %v676, 1.442695
      %v679 = vpow.pop %v678
      %v680 = vmul.f32 %v677, 1.442695
      %v681 = vpow.pop %v680
      %v682 = vadd.f32 %v679, 1.0
      %v683 = vadd.f32 %v681, 1.0
      %v684 = vrcp.pop %v682
      %v685 = vmul.f32 1.0, %v684
      %v686 = vrcp.pop %v683
      %v687 = vmul.f32 1.0, %v686
      %v688 = vmul.f32 %v674, %v685
      %v689 = vmul.f32 %v675, %v687
      %v690 = vld [vmem:[%s6] sm:$0x1]
      %vm691 = vcmp.eq.s32.totalorder %v540, 0
      %vm692 = vcmp.eq.s32.totalorder %v541, 0
      %v693 = vrot.slane %v688, 7
      %v694 = vrot.slane %v689, 7
      %vm695 = vcmp.lt.s32.totalorder %v540, 1
      %v696 = vsel %vm695, %v693, %v694
      %v697 = vsel %vm695, %v694, %v693
      %v698 = vsel %vm691, 1, 0
      %v699 = vsel %vm692, 1, 0
      %vm700 = vcmp.eq.s32.totalorder %v698, 1
      %vm701 = vcmp.eq.s32.totalorder %v699, 1
      %v702 = vsel %vm700, 0.0, %v697
      %v703 = vsel %vm701, 0.0, %v696
      %vm704 = vcmp.eq.s32.totalorder %v540, 15
      %vm705 = vcmp.eq.s32.totalorder %v541, 15
      %v706 = vrot.slane %v688, 1
      %v707 = vrot.slane %v689, 1
      %vm708 = vcmp.lt.s32.totalorder %v540, 7
      %v709 = vsel %vm708, %v706, %v707
      %v710 = vsel %vm708, %v707, %v706
      %v711 = vsel %vm704, 1, 0
      %v712 = vsel %vm705, 1, 0
      %vm713 = vcmp.eq.s32.totalorder %v711, 1
      %vm714 = vcmp.eq.s32.totalorder %v712, 1
      %v715 = vsel %vm713, 0.0, %v709
      %v716 = vsel %vm714, 0.0, %v710
      %719 = vrot.lane.b32.xlu0 %v688, 64
      %v720 = vpop.permute.xlu0 %719
      %721 = vrot.lane.b32.xlu0 %v689, 64
      %v722 = vpop.permute.xlu0 %721
      %v725 = vsel %vm545, %v702, %v720
      %v726 = vsel %vm545, %v703, %v722
      %v727 = vpack.c.bf16 %v726, %v725
      %v728 = vpack.c.bf16 %v716, %v715
      %v729 = vld [vmem:[%s5] sm:$0xf]
      %v730 = vld [vmem:[%s5 + $0x4] sm:$0xf]
      %v731 = vld [vmem:[%s5 + $0x8] sm:$0xf]
      %v732 = vld [vmem:[%s5 + $0xc] sm:$0xf]
      %v733 = vld [vmem:[%s5 + $0x10] sm:$0xf]
      %v734 = vld [vmem:[%s5 + $0x14] sm:$0xf]
      %v735 = vld [vmem:[%s5 + $0x18] sm:$0xf]
      %v736 = vld [vmem:[%s5 + $0x1c] sm:$0xf]
      %v737 = vld [vmem:[%s5 + $0x20] sm:$0xf]
      %v738 = vld [vmem:[%s5 + $0x24] sm:$0xf]
      %v739 = vld [vmem:[%s5 + $0x28] sm:$0xf]
      %v740 = vld [vmem:[%s5 + $0x2c] sm:$0xf]
      %v741 = vld [vmem:[%s5 + $0x30] sm:$0xf]
      %v742 = vld [vmem:[%s5 + $0x34] sm:$0xf]
      %v743 = vld [vmem:[%s5 + $0x38] sm:$0xf]
      %v744 = vld [vmem:[%s5 + $0x3c] sm:$0xf]
      %v745 = vld [vmem:[%s5 + $0x40] sm:$0xf]
      %v746 = vld [vmem:[%s5 + $0x44] sm:$0xf]
      %v747 = vld [vmem:[%s5 + $0x48] sm:$0xf]
      %v748 = vld [vmem:[%s5 + $0x4c] sm:$0xf]
      %v749 = vld [vmem:[%s5 + $0x50] sm:$0xf]
      %v750 = vld [vmem:[%s5 + $0x54] sm:$0xf]
      %v751 = vld [vmem:[%s5 + $0x58] sm:$0xf]
      %v752 = vld [vmem:[%s5 + $0x5c] sm:$0xf]
      %v754 = vlaneseq
      %v755 = vshrl.u32 %v754, 7
      %v756 = vsub.s32 0, %v755
      %v757 = vrot.slane %v690, %v756
      %v783 = vunpack.c.l.b16 %v729
      %v784 = vunpack.c.l.b16 %v730
      %v785 = vunpack.c.l.b16 %v731
      %v786 = vunpack.c.l.b16 %v732
      %v787 = vunpack.c.l.b16 %v733
      %v788 = vunpack.c.l.b16 %v734
      %v789 = vunpack.c.l.b16 %v735
      %v790 = vunpack.c.l.b16 %v736
      %v791 = vunpack.c.l.b16 %v737
      %v792 = vunpack.c.l.b16 %v738
      %v793 = vunpack.c.l.b16 %v739
      %v794 = vunpack.c.l.b16 %v740
      %v795 = vunpack.c.l.b16 %v741
      %v796 = vunpack.c.l.b16 %v742
      %v797 = vunpack.c.l.b16 %v743
      %v798 = vunpack.c.l.b16 %v744
      %v799 = vunpack.c.l.b16 %v745
      %v800 = vunpack.c.l.b16 %v746
      %v801 = vunpack.c.l.b16 %v747
      %v802 = vunpack.c.l.b16 %v748
      %v803 = vunpack.c.l.b16 %v749
      %v804 = vunpack.c.l.b16 %v750
      %v805 = vunpack.c.l.b16 %v751
      %v806 = vunpack.c.l.b16 %v752
      %v807 = vpack.c.b16 %v784, %v783
      %v808 = vpack.c.b16 %v786, %v785
      %v809 = vpack.c.b16 %v788, %v787
      %v810 = vpack.c.b16 %v790, %v789
      %v811 = vpack.c.b16 %v792, %v791
      %v812 = vpack.c.b16 %v794, %v793
      %v813 = vpack.c.b16 %v796, %v795
      %v814 = vpack.c.b16 %v798, %v797
      %v815 = vpack.c.b16 %v800, %v799
      %v816 = vpack.c.b16 %v802, %v801
      %v817 = vpack.c.b16 %v804, %v803
      %v818 = vpack.c.b16 %v806, %v805
      %v832 = vsel %vm545, %v728, 0
      %834 = vmatprep.subr.bf16.mxu0 0
      %835 = vmatpush1.bf16.msra.mxu0 %v807
      %836 = vmatprep.subr.bf16.mxu0 0
      %837 = vmatpush1.bf16.msra.mxu0 %v808
      %838 = vmatprep.subr.bf16.mxu0 0
      %839 = vmatpush1.bf16.msra.mxu0 %v809
      %840 = vmatprep.subr.bf16.mxu0 0
      %841 = vmatpush1.bf16.msra.mxu0 %v810
      %842 = vmatprep.subr.bf16.mxu0 0
      %843 = vmatpush1.bf16.msra.mxu0 %v811
      %844 = vmatprep.subr.bf16.mxu0 0
      %845 = vmatpush1.bf16.msra.mxu0 %v812
      %846 = vmatprep.subr.bf16.mxu0 0
      %847 = vmatpush1.bf16.msra.mxu0 %v813
      %848 = vmatprep.subr.bf16.mxu0 0
      %849 = vmatpush1.bf16.msra.mxu0 %v814
      %850 = vmatprep.subr.bf16.mxu0 0
      %851 = vmatpush1.bf16.msra.mxu0 %v815
      %852 = vmatprep.subr.bf16.mxu0 0
      %853 = vmatpush1.bf16.msra.mxu0 %v816
      %854 = vmatprep.subr.bf16.mxu0 0
      %855 = vmatpush1.bf16.msra.mxu0 %v817
      %856 = vmatprep.subr.bf16.mxu0 0
      %857 = vmatpush1.bf16.msra.mxu0 %v818
      %858 = vmatprep.subr.bf16.mxu0 0
      %859 = vmatpush1.bf16.msra.mxu0 0
      %860 = vmatprep.subr.bf16.mxu0 0
      %861 = vmatpush1.bf16.msra.mxu0 0
      %862 = vmatprep.subr.bf16.mxu0 0
      %863 = vmatpush1.bf16.msra.mxu0 0
      %864 = vmatprep.subr.bf16.mxu0 0
      %865 = vmatpush1.bf16.msra.mxu0 0
      %866 = vmatprep.mubr.bf16.mxu0 %v832
      %867 = vmatmul.mubr.bf16.gmra.mrb[0].mxu0 %v727
      %v868 = vpop.f32.mrb[0].mxu0
      %v869 = vadd.f32 %v757, %v868
      %v870 = vpop.f32.mrb[0].mxu0
      %v871 = vpop.f32.mrb[0].mxu0
      %v872 = vadd.f32 %v757, %v871
      %v873 = vpop.f32.mrb[0].mxu0
      %874 = vdwg.mxu0
      %v875 = vld [vmem:[%s530] sm:$0x1]
      %v876 = vxor.u32 %v875, 2147483648
      %v877 = vmul.f32 %v876, 1.442695
      %v878 = vpow.pop %v877
      %v879 = vadd.f32 %v878, 1.0
      %v880 = vrcp.pop %v879
      %v881 = vmul.f32 1.0, %v880
      %v882 = vmul.f32 %v875, %v881
      %v883 = vpack.c.bf16 %v882, %v882
      %v884 = vld [vmem:[%s7] sm:$0xf]
      %v885 = vld [vmem:[%s7 + $0x4] sm:$0xf]
      %v886 = vld [vmem:[%s7 + $0x8] sm:$0xf]
      %v887 = vld [vmem:[%s7 + $0xc] sm:$0xf]
      %v888 = vld [vmem:[%s8] sm:$0x1]
      %v893 = vunpack.c.l.b16 %v884
      %v894 = vunpack.c.l.b16 %v885
      %v895 = vunpack.c.l.b16 %v886
      %v896 = vunpack.c.l.b16 %v887
      %v897 = vpack.c.b16 %v894, %v893
      %v898 = vpack.c.b16 %v896, %v895
      %vm901 = vcmask 261120
      %v903 = vsel %vm901, %v883, 0
      %905 = vmatprep.subr.bf16.mxu0 0
      %906 = vmatpush1.bf16.msra.mxu0 %v897
      %907 = vmatprep.subr.bf16.mxu0 0
      %908 = vmatpush1.bf16.msra.mxu0 %v898
      %909 = vmatprep.subr.bf16.mxu0 0
      %910 = vmatpush1.bf16.msra.mxu0 0
      %911 = vmatprep.subr.bf16.mxu0 0
      %912 = vmatpush1.bf16.msra.mxu0 0
      %913 = vmatprep.subr.bf16.mxu0 0
      %914 = vmatpush1.bf16.msra.mxu0 0
      %915 = vmatprep.subr.bf16.mxu0 0
      %916 = vmatpush1.bf16.msra.mxu0 0
      %917 = vmatprep.subr.bf16.mxu0 0
      %918 = vmatpush1.bf16.msra.mxu0 0
      %919 = vmatprep.subr.bf16.mxu0 0
      %920 = vmatpush1.bf16.msra.mxu0 0
      %921 = vmatprep.subr.bf16.mxu0 0
      %922 = vmatpush1.bf16.msra.mxu0 0
      %923 = vmatprep.subr.bf16.mxu0 0
      %924 = vmatpush1.bf16.msra.mxu0 0
      %925 = vmatprep.subr.bf16.mxu0 0
      %926 = vmatpush1.bf16.msra.mxu0 0
      %927 = vmatprep.subr.bf16.mxu0 0
      %928 = vmatpush1.bf16.msra.mxu0 0
      %929 = vmatprep.subr.bf16.mxu0 0
      %930 = vmatpush1.bf16.msra.mxu0 0
      %931 = vmatprep.subr.bf16.mxu0 0
      %932 = vmatpush1.bf16.msra.mxu0 0
      %933 = vmatprep.subr.bf16.mxu0 0
      %934 = vmatpush1.bf16.msra.mxu0 0
      %935 = vmatprep.subr.bf16.mxu0 0
      %936 = vmatpush1.bf16.msra.mxu0 0
      %937 = vmatprep.mubr.bf16.mxu0 0
      %938 = vmatmul.mubr.bf16.gmra.mrb[0].mxu0 %v903
      %v939 = vpop.f32.mrb[0].mxu0
      %v940 = vadd.f32 %v888, %v939
      %v941 = vpop.f32.mrb[0].mxu0
      %v942 = vpop.f32.mrb[0].mxu0
      %v943 = vpop.f32.mrb[0].mxu0
      %944 = vdwg.mxu0
      %v945 = vlaneseq
      %v946 = vshrl.u32 %v945, 7
      %v947 = vsub.s32 0, %v946
      %v948 = vrot.slane %v940, %v947
      %v949 = vadd.f32 %v869, %v948
      %v950 = vadd.f32 %v872, %v948
      %v951 = vld [vmem:[%s9] sm:$0x1]
      %v952 = vld [vmem:[%s10] sm:$0x1]
      %v953 = vld [vmem:[%s11] sm:$0x3]
      %v954 = vadd.f32 %v949, %v950
      %v955 = vrot.slane %v954, 4
      %v956 = vadd.f32 %v954, %v955
      %v957 = vrot.slane %v956, 2
      %v958 = vadd.f32 %v956, %v957
      %v959 = vrot.slane %v958, 1
      %v960 = vadd.f32 %v958, %v959
      %v961 = vmul.f32 %v949, %v949
      %v962 = vmul.f32 %v950, %v950
      %v963 = vadd.f32 %v961, %v962
      %v964 = vrot.slane %v963, 4
      %v965 = vadd.f32 %v963, %v964
      %v966 = vrot.slane %v965, 2
      %v967 = vadd.f32 %v965, %v966
      %v968 = vrot.slane %v967, 1
      %v969 = vadd.f32 %v967, %v968
      %v970 = vmul.f32 %v960, %v953
      %vm971 = vcmask 1040384
      %v972 = vsel %vm971, %v970, 0.0
      %973 = vadd.xlane.f32.xlu0 %v972
      %v974 = vpop.xlane.xlu0 %973
      %v975 = vrot.slane %v974, 4
      %v976 = vadd.f32 %v974, %v975
      %v977 = vrot.slane %v976, 2
      %v978 = vadd.f32 %v976, %v977
      %v979 = vrot.slane %v978, 1
      %v980 = vadd.f32 %v978, %v979
      %s981 = vtos %v980
      %v982 = vrcp.pop 1024.0
      %s983 = vtos %v982
      %s984 = smul.f32 %s981, %s983
      %v985 = vmul.f32 %v969, %v953
      %v986 = vsel %vm971, %v985, 0.0
      %987 = vadd.xlane.f32.xlu0 %v986
      %v988 = vpop.xlane.xlu0 %987
      %v989 = vrot.slane %v988, 4
      %v990 = vadd.f32 %v988, %v989
      %v991 = vrot.slane %v990, 2
      %v992 = vadd.f32 %v990, %v991
      %v993 = vrot.slane %v992, 1
      %v994 = vadd.f32 %v992, %v993
      %s995 = vtos %v994
      %v996 = vrcp.pop 1024.0
      %s997 = vtos %v996
      %s998 = smul.f32 %s995, %s997
      %s999 = smul.f32 %s984, %s984
      %s1000 = ssub.f32 %s998, %s999
      %s1001 = sadd.f32 %s1000, 1e-06
      %v1002 = vstv %s1001
      %v1003 = vrsqrt.pop %v1002
      %s1004 = vtos %v1003
      %v1005 = vstv %s1004
      %v1006 = vmul.f32 %v953, %v1005
      %v1007 = vadd.f32 %v1006, 0.0
      %s1008 = smul.f32 %s984, %s1004
      %v1009 = vstv %s1008
      %v1010 = vmul.f32 %v953, %v1009
      %v1011 = vadd.f32 %v1010, 0.0
      %v1013 = vrot.slane %v970, 1
      %v1015 = vsel %vm971, %v1013, 0.0
      %1016 = vadd.xlane.f32.xlu0 %v1015
      %v1017 = vpop.xlane.xlu0 %1016
      %v1018 = vrot.slane %v1017, 4
      %v1019 = vadd.f32 %v1017, %v1018
      %v1020 = vrot.slane %v1019, 2
      %v1021 = vadd.f32 %v1019, %v1020
      %v1022 = vrot.slane %v1021, 1
      %v1023 = vadd.f32 %v1021, %v1022
      %s1024 = vtos %v1023
      %v1025 = vrcp.pop 1024.0
      %s1026 = vtos %v1025
      %s1027 = smul.f32 %s1024, %s1026
      %v1029 = vrot.slane %v985, 1
      %v1031 = vsel %vm971, %v1029, 0.0
      %1032 = vadd.xlane.f32.xlu0 %v1031
      %v1033 = vpop.xlane.xlu0 %1032
      %v1034 = vrot.slane %v1033, 4
      %v1035 = vadd.f32 %v1033, %v1034
      %v1036 = vrot.slane %v1035, 2
      %v1037 = vadd.f32 %v1035, %v1036
      %v1038 = vrot.slane %v1037, 1
      %v1039 = vadd.f32 %v1037, %v1038
      %s1040 = vtos %v1039
      %v1041 = vrcp.pop 1024.0
      %s1042 = vtos %v1041
      %s1043 = smul.f32 %s1040, %s1042
      %s1044 = smul.f32 %s1027, %s1027
      %s1045 = ssub.f32 %s1043, %s1044
      %s1046 = sadd.f32 %s1045, 1e-06
      %v1047 = vstv %s1046
      %v1048 = vrsqrt.pop %v1047
      %s1049 = vtos %v1048
      %v1050 = vstv %s1049
      %v1051 = vmul.f32 %v953, %v1050
      %v1053 = vrot.slane %v1051, 1
      %v1055 = vadd.f32 %v1007, %v1053
      %s1056 = smul.f32 %s1027, %s1049
      %v1057 = vstv %s1056
      %v1058 = vmul.f32 %v953, %v1057
      %v1060 = vrot.slane %v1058, 1
      %v1062 = vadd.f32 %v1011, %v1060
      %v1063 = vmul.f32 %v1055, %v951
      %v1064 = vmul.f32 %v1062, %v951
      %v1065 = vsub.f32 %v952, %v1064
      %v1066 = vlaneseq
      %v1067 = vshrl.u32 %v1066, 7
      %v1068 = vsub.s32 0, %v1067
      %v1069 = vrot.slane %v1063, %v1068
      %v1070 = vmul.f32 %v949, %v1069
      %v1071 = vmul.f32 %v950, %v1069
      %v1073 = vlaneseq
      %v1074 = vshrl.u32 %v1073, 7
      %v1075 = vsub.s32 0, %v1074
      %v1076 = vrot.slane %v1065, %v1075
      %v1078 = vadd.f32 %v1070, %v1076
      %v1079 = vadd.f32 %v1071, %v1076
      %v1080 = vxor.u32 %v1078, 2147483648
      %v1081 = vxor.u32 %v1079, 2147483648
      %v1082 = vmul.f32 %v1080, 1.442695
      %v1083 = vpow.pop %v1082
      %v1084 = vmul.f32 %v1081, 1.442695
      %v1085 = vpow.pop %v1084
      %v1086 = vadd.f32 %v1083, 1.0
      %v1087 = vadd.f32 %v1085, 1.0
      %v1088 = vrcp.pop %v1086
      %v1089 = vmul.f32 1.0, %v1088
      %v1090 = vrcp.pop %v1087
      %v1091 = vmul.f32 1.0, %v1090
      %v1092 = vmul.f32 %v1078, %v1089
      %v1093 = vmul.f32 %v1079, %v1091
      %v1094 = vld [vmem:[%s13] sm:$0x1]
      %v1095 = vrot.slane %v1092, 7
      %v1096 = vrot.slane %v1093, 7
      %v1097 = vsel %vm695, %v1095, %v1096
      %v1098 = vsel %vm695, %v1096, %v1095
      %v1099 = vsel %vm700, 0.0, %v1098
      %v1100 = vsel %vm701, 0.0, %v1097
      %v1101 = vrot.slane %v1092, 1
      %v1102 = vrot.slane %v1093, 1
      %v1103 = vsel %vm708, %v1101, %v1102
      %v1104 = vsel %vm708, %v1102, %v1101
      %v1105 = vsel %vm713, 0.0, %v1103
      %v1106 = vsel %vm714, 0.0, %v1104
      %v1107 = vpack.c.bf16 %v1100, %v1099
      %v1108 = vpack.c.bf16 %v1093, %v1092
      %v1109 = vpack.c.bf16 %v1106, %v1105
      %v1110 = vld [vmem:[%s12] sm:$0xf]
      %v1111 = vld [vmem:[%s12 + $0x4] sm:$0xf]
      %v1112 = vld [vmem:[%s12 + $0x8] sm:$0xf]
      %v1113 = vld [vmem:[%s12 + $0xc] sm:$0xf]
      %v1114 = vld [vmem:[%s12 + $0x10] sm:$0xf]
      %v1115 = vld [vmem:[%s12 + $0x14] sm:$0xf]
      %v1116 = vld [vmem:[%s12 + $0x18] sm:$0xf]
      %v1117 = vld [vmem:[%s12 + $0x1c] sm:$0xf]
      %v1118 = vld [vmem:[%s12 + $0x20] sm:$0xf]
      %v1119 = vld [vmem:[%s12 + $0x24] sm:$0xf]
      %v1120 = vld [vmem:[%s12 + $0x28] sm:$0xf]
      %v1121 = vld [vmem:[%s12 + $0x2c] sm:$0xf]
      %v1122 = vld [vmem:[%s12 + $0x30] sm:$0xf]
      %v1123 = vld [vmem:[%s12 + $0x34] sm:$0xf]
      %v1124 = vld [vmem:[%s12 + $0x38] sm:$0xf]
      %v1125 = vld [vmem:[%s12 + $0x3c] sm:$0xf]
      %v1126 = vld [vmem:[%s12 + $0x40] sm:$0xf]
      %v1127 = vld [vmem:[%s12 + $0x44] sm:$0xf]
      %v1128 = vld [vmem:[%s12 + $0x48] sm:$0xf]
      %v1129 = vld [vmem:[%s12 + $0x4c] sm:$0xf]
      %v1130 = vld [vmem:[%s12 + $0x50] sm:$0xf]
      %v1131 = vld [vmem:[%s12 + $0x54] sm:$0xf]
      %v1132 = vld [vmem:[%s12 + $0x58] sm:$0xf]
      %v1133 = vld [vmem:[%s12 + $0x5c] sm:$0xf]
      %v1134 = vld [vmem:[%s12 + $0x60] sm:$0xf]
      %v1135 = vld [vmem:[%s12 + $0x64] sm:$0xf]
      %v1136 = vld [vmem:[%s12 + $0x68] sm:$0xf]
      %v1137 = vld [vmem:[%s12 + $0x6c] sm:$0xf]
      %v1138 = vld [vmem:[%s12 + $0x70] sm:$0xf]
      %v1139 = vld [vmem:[%s12 + $0x74] sm:$0xf]
      %v1140 = vld [vmem:[%s12 + $0x78] sm:$0xf]
      %v1141 = vld [vmem:[%s12 + $0x7c] sm:$0xf]
      %v1142 = vld [vmem:[%s12 + $0x80] sm:$0xf]
      %v1143 = vld [vmem:[%s12 + $0x84] sm:$0xf]
      %v1144 = vld [vmem:[%s12 + $0x88] sm:$0xf]
      %v1145 = vld [vmem:[%s12 + $0x8c] sm:$0xf]
      %v1146 = vld [vmem:[%s12 + $0x90] sm:$0xf]
      %v1147 = vld [vmem:[%s12 + $0x94] sm:$0xf]
      %v1148 = vld [vmem:[%s12 + $0x98] sm:$0xf]
      %v1149 = vld [vmem:[%s12 + $0x9c] sm:$0xf]
      %v1150 = vld [vmem:[%s12 + $0xa0] sm:$0xf]
      %v1151 = vld [vmem:[%s12 + $0xa4] sm:$0xf]
      %v1152 = vld [vmem:[%s12 + $0xa8] sm:$0xf]
      %v1153 = vld [vmem:[%s12 + $0xac] sm:$0xf]
      %v1154 = vld [vmem:[%s12 + $0xb0] sm:$0xf]
      %v1155 = vld [vmem:[%s12 + $0xb4] sm:$0xf]
      %v1156 = vld [vmem:[%s12 + $0xb8] sm:$0xf]
      %v1157 = vld [vmem:[%s12 + $0xbc] sm:$0xf]
      %v1159 = vlaneseq
      %v1160 = vshrl.u32 %v1159, 7
      %v1161 = vsub.s32 0, %v1160
      %v1162 = vrot.slane %v1094, %v1161
      %v1212 = vunpack.c.l.b16 %v1110
      %v1213 = vunpack.c.l.b16 %v1111
      %v1214 = vunpack.c.l.b16 %v1112
      %v1215 = vunpack.c.l.b16 %v1113
      %v1216 = vunpack.c.l.b16 %v1114
      %v1217 = vunpack.c.l.b16 %v1115
      %v1218 = vunpack.c.l.b16 %v1116
      %v1219 = vunpack.c.l.b16 %v1117
      %v1220 = vunpack.c.l.b16 %v1118
      %v1221 = vunpack.c.l.b16 %v1119
      %v1222 = vunpack.c.l.b16 %v1120
      %v1223 = vunpack.c.l.b16 %v1121
      %v1224 = vunpack.c.l.b16 %v1122
      %v1225 = vunpack.c.l.b16 %v1123
      %v1226 = vunpack.c.l.b16 %v1124
      %v1227 = vunpack.c.l.b16 %v1125
      %v1228 = vunpack.c.l.b16 %v1126
      %v1229 = vunpack.c.l.b16 %v1127
      %v1230 = vunpack.c.l.b16 %v1128
      %v1231 = vunpack.c.l.b16 %v1129
      %v1232 = vunpack.c.l.b16 %v1130
      %v1233 = vunpack.c.l.b16 %v1131
      %v1234 = vunpack.c.l.b16 %v1132
      %v1235 = vunpack.c.l.b16 %v1133
      %v1236 = vunpack.c.l.b16 %v1134
      %v1237 = vunpack.c.l.b16 %v1135
      %v1238 = vunpack.c.l.b16 %v1136
      %v1239 = vunpack.c.l.b16 %v1137
      %v1240 = vunpack.c.l.b16 %v1138
      %v1241 = vunpack.c.l.b16 %v1139
      %v1242 = vunpack.c.l.b16 %v1140
      %v1243 = vunpack.c.l.b16 %v1141
      %v1244 = vunpack.c.l.b16 %v1142
      %v1245 = vunpack.c.l.b16 %v1143
      %v1246 = vunpack.c.l.b16 %v1144
      %v1247 = vunpack.c.l.b16 %v1145
      %v1248 = vunpack.c.l.b16 %v1146
      %v1249 = vunpack.c.l.b16 %v1147
      %v1250 = vunpack.c.l.b16 %v1148
      %v1251 = vunpack.c.l.b16 %v1149
      %v1252 = vunpack.c.l.b16 %v1150
      %v1253 = vunpack.c.l.b16 %v1151
      %v1254 = vunpack.c.l.b16 %v1152
      %v1255 = vunpack.c.l.b16 %v1153
      %v1256 = vunpack.c.l.b16 %v1154
      %v1257 = vunpack.c.l.b16 %v1155
      %v1258 = vunpack.c.l.b16 %v1156
      %v1259 = vunpack.c.l.b16 %v1157
      %v1260 = vpack.c.b16 %v1213, %v1212
      %v1261 = vpack.c.b16 %v1215, %v1214
      %v1262 = vpack.c.b16 %v1217, %v1216
      %v1263 = vpack.c.b16 %v1219, %v1218
      %v1264 = vpack.c.b16 %v1221, %v1220
      %v1265 = vpack.c.b16 %v1223, %v1222
      %v1266 = vpack.c.b16 %v1225, %v1224
      %v1267 = vpack.c.b16 %v1227, %v1226
      %v1268 = vpack.c.b16 %v1229, %v1228
      %v1269 = vpack.c.b16 %v1231, %v1230
      %v1270 = vpack.c.b16 %v1233, %v1232
      %v1271 = vpack.c.b16 %v1235, %v1234
      %v1272 = vpack.c.b16 %v1237, %v1236
      %v1273 = vpack.c.b16 %v1239, %v1238
      %v1274 = vpack.c.b16 %v1241, %v1240
      %v1275 = vpack.c.b16 %v1243, %v1242
      %v1276 = vpack.c.b16 %v1245, %v1244
      %v1277 = vpack.c.b16 %v1247, %v1246
      %v1278 = vpack.c.b16 %v1249, %v1248
      %v1279 = vpack.c.b16 %v1251, %v1250
      %v1280 = vpack.c.b16 %v1253, %v1252
      %v1281 = vpack.c.b16 %v1255, %v1254
      %v1282 = vpack.c.b16 %v1257, %v1256
      %v1283 = vpack.c.b16 %v1259, %v1258
      %1308 = vmatprep.subr.bf16.mxu0 0
      %1309 = vmatpush1.bf16.msra.mxu0 %v1260
      %1310 = vmatprep.subr.bf16.mxu0 0
      %1311 = vmatpush1.bf16.msra.mxu0 %v1261
      %1312 = vmatprep.subr.bf16.mxu0 0
      %1313 = vmatpush1.bf16.msra.mxu0 %v1262
      %1314 = vmatprep.subr.bf16.mxu0 0
      %1315 = vmatpush1.bf16.msra.mxu0 %v1263
      %1316 = vmatprep.subr.bf16.mxu0 0
      %1317 = vmatpush1.bf16.msra.mxu0 %v1264
      %1318 = vmatprep.subr.bf16.mxu0 0
      %1319 = vmatpush1.bf16.msra.mxu0 %v1265
      %1320 = vmatprep.subr.bf16.mxu0 0
      %1321 = vmatpush1.bf16.msra.mxu0 %v1266
      %1322 = vmatprep.subr.bf16.mxu0 0
      %1323 = vmatpush1.bf16.msra.mxu0 %v1267
      %1324 = vmatprep.subr.bf16.mxu0 0
      %1325 = vmatpush1.bf16.msra.mxu0 %v1268
      %1326 = vmatprep.subr.bf16.mxu0 0
      %1327 = vmatpush1.bf16.msra.mxu0 %v1269
      %1328 = vmatprep.subr.bf16.mxu0 0
      %1329 = vmatpush1.bf16.msra.mxu0 %v1270
      %1330 = vmatprep.subr.bf16.mxu0 0
      %1331 = vmatpush1.bf16.msra.mxu0 %v1271
      %1332 = vmatprep.subr.bf16.mxu0 0
      %1333 = vmatpush1.bf16.msra.mxu0 %v1272
      %1334 = vmatprep.subr.bf16.mxu0 0
      %1335 = vmatpush1.bf16.msra.mxu0 %v1273
      %1336 = vmatprep.subr.bf16.mxu0 0
      %1337 = vmatpush1.bf16.msra.mxu0 %v1274
      %1338 = vmatprep.subr.bf16.mxu0 0
      %1339 = vmatpush1.bf16.msra.mxu0 %v1275
      %1340 = vmatprep.mubr.bf16.mxu0 %v1108
      %1341 = vmatmul.mubr.bf16.gmra.mrb[0].mxu0 %v1107
      %v1342 = vpop.f32.mrb[0].mxu0
      %v1343 = vadd.f32 %v1162, %v1342
      %v1344 = vpop.f32.mrb[0].mxu0
      %v1345 = vpop.f32.mrb[0].mxu0
      %v1346 = vadd.f32 %v1162, %v1345
      %v1347 = vpop.f32.mrb[0].mxu0
      %1348 = vdwg.mxu0
      %1349 = vmatprep.subr.bf16.mxu0 0
      %1350 = vmatpush1.bf16.msra.mxu0 %v1276
      %1351 = vmatprep.subr.bf16.mxu0 0
      %1352 = vmatpush1.bf16.msra.mxu0 %v1277
      %1353 = vmatprep.subr.bf16.mxu0 0
      %1354 = vmatpush1.bf16.msra.mxu0 %v1278
      %1355 = vmatprep.subr.bf16.mxu0 0
      %1356 = vmatpush1.bf16.msra.mxu0 %v1279
      %1357 = vmatprep.subr.bf16.mxu0 0
      %1358 = vmatpush1.bf16.msra.mxu0 %v1280
      %1359 = vmatprep.subr.bf16.mxu0 0
      %1360 = vmatpush1.bf16.msra.mxu0 %v1281
      %1361 = vmatprep.subr.bf16.mxu0 0
      %1362 = vmatpush1.bf16.msra.mxu0 %v1282
      %1363 = vmatprep.subr.bf16.mxu0 0
      %1364 = vmatpush1.bf16.msra.mxu0 %v1283
      %1365 = vmatprep.subr.bf16.mxu0 0
      %1366 = vmatpush1.bf16.msra.mxu0 0
      %1367 = vmatprep.subr.bf16.mxu0 0
      %1368 = vmatpush1.bf16.msra.mxu0 0
      %1369 = vmatprep.subr.bf16.mxu0 0
      %1370 = vmatpush1.bf16.msra.mxu0 0
      %1371 = vmatprep.subr.bf16.mxu0 0
      %1372 = vmatpush1.bf16.msra.mxu0 0
      %1373 = vmatprep.subr.bf16.mxu0 0
      %1374 = vmatpush1.bf16.msra.mxu0 0
      %1375 = vmatprep.subr.bf16.mxu0 0
      %1376 = vmatpush1.bf16.msra.mxu0 0
      %1377 = vmatprep.subr.bf16.mxu0 0
      %1378 = vmatpush1.bf16.msra.mxu0 0
      %1379 = vmatprep.subr.bf16.mxu0 0
      %1380 = vmatpush1.bf16.msra.mxu0 0
      %1381 = vmatprep.mubr.bf16.mxu0 0
      %1382 = vmatmul.mubr.bf16.gmra.mrb[0].mxu0 %v1109
      %v1383 = vpop.f32.mrb[0].mxu0
      %v1384 = vadd.f32 %v1343, %v1383
      %v1385 = vpop.f32.mrb[0].mxu0
      %v1386 = vpop.f32.mrb[0].mxu0
      %v1387 = vadd.f32 %v1346, %v1386
      %v1388 = vpop.f32.mrb[0].mxu0
      %1389 = vdwg.mxu0
      %v1390 = vpack.c.bf16 %v538, %v537
      %v1391 = vld [vmem:[%s14] sm:$0xf]
      %v1392 = vld [vmem:[%s14 + $0x4] sm:$0xf]
      %v1393 = vld [vmem:[%s14 + $0x8] sm:$0xf]
      %v1394 = vld [vmem:[%s14 + $0xc] sm:$0xf]
      %v1395 = vld [vmem:[%s14 + $0x10] sm:$0xf]
      %v1396 = vld [vmem:[%s14 + $0x14] sm:$0xf]
      %v1397 = vld [vmem:[%s14 + $0x18] sm:$0xf]
      %v1398 = vld [vmem:[%s14 + $0x1c] sm:$0xf]
      %v1399 = vld [vmem:[%s15] sm:$0x1]
      %v1401 = vlaneseq
      %v1402 = vshrl.u32 %v1401, 7
      %v1403 = vsub.s32 0, %v1402
      %v1404 = vrot.slane %v1399, %v1403
      %v1414 = vunpack.c.l.b16 %v1391
      %v1415 = vunpack.c.l.b16 %v1392
      %v1416 = vunpack.c.l.b16 %v1393
      %v1417 = vunpack.c.l.b16 %v1394
      %v1418 = vunpack.c.l.b16 %v1395
      %v1419 = vunpack.c.l.b16 %v1396
      %v1420 = vunpack.c.l.b16 %v1397
      %v1421 = vunpack.c.l.b16 %v1398
      %v1422 = vpack.c.b16 %v1415, %v1414
      %v1423 = vpack.c.b16 %v1417, %v1416
      %v1424 = vpack.c.b16 %v1419, %v1418
      %v1425 = vpack.c.b16 %v1421, %v1420
      %v1431 = vsel %vm545, %v1390, 0
      %1433 = vmatprep.subr.bf16.mxu0 0
      %1434 = vmatpush1.bf16.msra.mxu0 %v1422
      %1435 = vmatprep.subr.bf16.mxu0 0
      %1436 = vmatpush1.bf16.msra.mxu0 %v1423
      %1437 = vmatprep.subr.bf16.mxu0 0
      %1438 = vmatpush1.bf16.msra.mxu0 %v1424
      %1439 = vmatprep.subr.bf16.mxu0 0
      %1440 = vmatpush1.bf16.msra.mxu0 %v1425
      %1441 = vmatprep.subr.bf16.mxu0 0
      %1442 = vmatpush1.bf16.msra.mxu0 0
      %1443 = vmatprep.subr.bf16.mxu0 0
      %1444 = vmatpush1.bf16.msra.mxu0 0
      %1445 = vmatprep.subr.bf16.mxu0 0
      %1446 = vmatpush1.bf16.msra.mxu0 0
      %1447 = vmatprep.subr.bf16.mxu0 0
      %1448 = vmatpush1.bf16.msra.mxu0 0
      %1449 = vmatprep.subr.bf16.mxu0 0
      %1450 = vmatpush1.bf16.msra.mxu0 0
      %1451 = vmatprep.subr.bf16.mxu0 0
      %1452 = vmatpush1.bf16.msra.mxu0 0
      %1453 = vmatprep.subr.bf16.mxu0 0
      %1454 = vmatpush1.bf16.msra.mxu0 0
      %1455 = vmatprep.subr.bf16.mxu0 0
      %1456 = vmatpush1.bf16.msra.mxu0 0
      %1457 = vmatprep.subr.bf16.mxu0 0
      %1458 = vmatpush1.bf16.msra.mxu0 0
      %1459 = vmatprep.subr.bf16.mxu0 0
      %1460 = vmatpush1.bf16.msra.mxu0 0
      %1461 = vmatprep.subr.bf16.mxu0 0
      %1462 = vmatpush1.bf16.msra.mxu0 0
      %1463 = vmatprep.subr.bf16.mxu0 0
      %1464 = vmatpush1.bf16.msra.mxu0 0
      %1465 = vmatprep.mubr.bf16.mxu0 0
      %1466 = vmatmul.mubr.bf16.gmra.mrb[0].mxu0 %v1431
      %v1467 = vpop.f32.mrb[0].mxu0
      %v1468 = vadd.f32 %v1404, %v1467
      %v1469 = vpop.f32.mrb[0].mxu0
      %v1470 = vpop.f32.mrb[0].mxu0
      %v1471 = vadd.f32 %v1404, %v1470
      %v1472 = vpop.f32.mrb[0].mxu0
      %1473 = vdwg.mxu0
      %v1474 = vadd.f32 %v1468, %v1384
      %v1475 = vadd.f32 %v1471, %v1387
      %v1476 = vmul.f32 %v1474, 0.70710677
      %v1477 = vmul.f32 %v1475, 0.70710677
      %1478 = vst [vmem:[%s535] sm:$0xff] %v1476
      %1479 = vst [vmem:[%s535 + $0x8] sm:$0xff] %v1477
      %p1480 = scmp.lt.s32.totalorder %s27, 1
      %s1481 = scalar_select %p1480, %s27, 1
      %s1482 = smul.addr %s1481, 2
      %s1483 = smul.addr %s1482, 8
      %s1484 = scalar_lea.vmem %s16, %s1483
      // Predicated region
      $region85: #{resnet_block_biggan.1} parent=83 // pred_check
        %p1485 = pneg %p391
      $region86: #{resnet_block_biggan.1} parent=83 // pred_check_branch
        %1487 = sbr.rel (%p1485) target = $region88
      $region87: #{resnet_block_biggan.1} parent=83 // pred_region
        _
      $region88: #{resnet_block_biggan.1} parent=83 // pred_fallthru
        _
    $region84: #{resnet_block_biggan.1} parent=5 // pred_fallthru
      _
    %p1488 = scmp.le.s32.totalorder 2, %s22
    // Predicated region
    $region89: #{resnet_block_biggan.1} parent=5 // pred_check
      %p1489 = pneg %p1488
    $region90: #{resnet_block_biggan.1} parent=5 // pred_check_branch
      %1491 = sbr.rel (%p1489) target = $region92
    $region91: #{resnet_block_biggan.1} parent=5 // pred_region
      %s1492 = ssub.s32 %s22, 2
      // Predicated region
      $region93: #{resnet_block_biggan.1} parent=91 // pred_check
        %p1493 = pneg %p397
      $region94: #{resnet_block_biggan.1} parent=91 // pred_check_branch
        %1495 = sbr.rel (%p1493) target = $region96
      $region95: #{resnet_block_biggan.1} parent=91 // pred_region
        %p1496 = scmp.lt.s32.totalorder %s28, 1
        %s1497 = scalar_select %p1496, %s28, 1
        %s1498 = smul.addr %s1497, 2
        %s1499 = smul.addr %s1498, 8
        %s1500 = scalar_lea.vmem %s16, %s1499
      $region96: #{resnet_block_biggan.1} parent=91 // pred_fallthru
        _
    $region92: #{resnet_block_biggan.1} parent=5 // pred_fallthru
      _
  $region6: #{resnet_block_biggan.1} parent=0 // loop_footer
    %s26 = sadd.s32 1, %s22
  $region7: #{resnet_block_biggan.1} parent=0 // loop_footer_branch
    %21 = sbr.rel target = $region3
  $region8: #{resnet_block_biggan.1} parent=0 // loop_exit
    _

</llo_original>
